<compile_context>
chip_gen: v7x
topology: tpu7x:2x2x1
jax: 0.10.0
libtpu: 0.0.40
codegen_flags: <defaults>
</compile_context>

<pallas_src>
import functools

import jax
import jax.numpy as jnp
from jax.experimental import pallas as pl
from jax.experimental.pallas import tpu as pltpu


def _round_up(v, m):
    return ((v + m - 1) // m) * m


# -----------------------------------------------------------------------------
# Pallas kernel: whole MLP forward for one batch tile (transposed layout).
#   x_ref     : (in_f, T)
#   w_*       : (fan_out, fan_in)   (PyTorch nn.Linear native layout)
#   b_*       : (fan_out, 1)        (broadcasts along lanes / batch)
#   o_ref     : (out_f, T)
# -----------------------------------------------------------------------------
def _mlp_kernel(num_hidden, act_dtype, *refs):
    if num_hidden > 0:
        (x_ref, w_in_ref, b_in_ref, w_hid_ref, b_hid_ref,
         w_out_ref, b_out_ref, o_ref) = refs
    else:
        x_ref, w_in_ref, b_in_ref, w_out_ref, b_out_ref, o_ref = refs
        w_hid_ref = b_hid_ref = None

    def dense_tanh(w, b, h):
        # (fan_out, fan_in) @ (fan_in, T) on the MXU with f32 accumulation;
        # bias broadcast along lanes; activation in act_dtype (bf16 on v6e/v7x,
        # f32 on v5e / by default).
        acc = jnp.dot(w, h, preferred_element_type=jnp.float32)
        acc = acc + b.astype(jnp.float32)
        return jnp.tanh(acc.astype(act_dtype))

    h = dense_tanh(w_in_ref[...], b_in_ref[...], x_ref[...])
    for i in range(num_hidden):          # num_hidden is a compile-time constant
        h = dense_tanh(w_hid_ref[i], b_hid_ref[i], h)

    out = jnp.dot(w_out_ref[...], h, preferred_element_type=jnp.float32)
    out = out + b_out_ref[...].astype(jnp.float32)
    o_ref[...] = out.astype(o_ref.dtype)


# -----------------------------------------------------------------------------
# Wrapper: transposes to lane-dense layout, pads & tiles the batch dimension,
# keeps all weights resident per tile.
# -----------------------------------------------------------------------------
def mlp_forward(x, params, *, batch_tile=512, compute_dtype=None):
    """x: (B, in_features) row-major (PyTorch layout). Returns (B, out_features).

    compute_dtype: set to jnp.bfloat16 on v6e/v7x to halve EUP/VPU/memory cost;
    leave None (f32) on v5e.
    """
    w_in, b_in, w_hid, b_hid, w_out, b_out = params
    B, in_f = x.shape
    H = w_in.shape[0]
    out_f = w_out.shape[0]
    num_hidden = w_hid.shape[0]
    out_dtype = x.dtype

    if compute_dtype is not None:
        # Ideally weights are stored in compute_dtype by the caller; casting
        # here is a cheap one-off XLA convert outside the kernel.
        cast = lambda a: a.astype(compute_dtype)
        x = cast(x)
        w_in, b_in, w_hid, b_hid, w_out, b_out = map(
            cast, (w_in, b_in, w_hid, b_hid, w_out, b_out))
    act_dtype = x.dtype

    # Lane-aligned batch tile; pad B up so no divisibility constraint on callers.
    tile = max(128, min(_round_up(batch_tile, 128), _round_up(B, 128)))
    B_pad = _round_up(B, tile)
    grid = (B_pad // tile,)

    # Batch rides the 128-lane (last) axis.
    xt = jnp.pad(x.T, ((0, 0), (0, B_pad - B)))

    kernel = functools.partial(_mlp_kernel, num_hidden, act_dtype)

    in_specs = [
        pl.BlockSpec((in_f, tile), lambda i: (0, i)),        # x tile (in_f, T)
        pl.BlockSpec((H, in_f), lambda i: (0, 0)),           # W_in
        pl.BlockSpec((H, 1), lambda i: (0, 0)),              # b_in
    ]
    operands = [xt, w_in, b_in]
    if num_hidden > 0:
        in_specs += [
            pl.BlockSpec((num_hidden, H, H), lambda i: (0, 0, 0)),   # W_hidden
            pl.BlockSpec((num_hidden, H, 1), lambda i: (0, 0, 0)),   # b_hidden
        ]
        operands += [w_hid, b_hid]
    in_specs += [
        pl.BlockSpec((out_f, H), lambda i: (0, 0)),          # W_out
        pl.BlockSpec((out_f, 1), lambda i: (0, 0)),          # b_out
    ]
    operands += [w_out, b_out]

    out_t = pl.pallas_call(
        kernel,
        out_shape=jax.ShapeDtypeStruct((out_f, B_pad), out_dtype),
        grid_spec=pltpu.PrefetchScalarGridSpec(
            num_scalar_prefetch=0,
            grid=grid,
            in_specs=in_specs,
            out_specs=pl.BlockSpec((out_f, tile), lambda i: (0, i)),
        ),
        compiler_params=pltpu.CompilerParams(
            dimension_semantics=("parallel",),   # shards batch tiles across TCs on v7x
        ),
    )(*operands)

    return out_t[:, :B].T


# -----------------------------------------------------------------------------
# Deterministic parameter init (mimics PyTorch nn.Linear default:
# uniform(-1/sqrt(fan_in), 1/sqrt(fan_in)); weights kept in PyTorch's native
# (out_features, in_features) layout, biases as (out_features, 1)).
# -----------------------------------------------------------------------------
def init_mlp_params(key, in_features, out_features, num_layers, num_neurons,
                    dtype=jnp.float32):
    num_hidden = num_layers - 1
    keys = jax.random.split(key, 2 * (num_hidden + 2))
    ki = iter(keys)

    def linear(kw, kb, fan_in, fan_out):
        bound = 1.0 / float(fan_in) ** 0.5
        w = jax.random.uniform(kw, (fan_out, fan_in), dtype, -bound, bound)
        b = jax.random.uniform(kb, (fan_out, 1), dtype, -bound, bound)
        return w, b

    w_in, b_in = linear(next(ki), next(ki), in_features, num_neurons)

    w_hid_list, b_hid_list = [], []
    for _ in range(num_hidden):
        w, b = linear(next(ki), next(ki), num_neurons, num_neurons)
        w_hid_list.append(w)
        b_hid_list.append(b)
    if num_hidden > 0:
        w_hid = jnp.stack(w_hid_list, axis=0)        # (num_hidden, H, H)
        b_hid = jnp.stack(b_hid_list, axis=0)        # (num_hidden, H, 1)
    else:
        w_hid = jnp.zeros((0, num_neurons, num_neurons), dtype)
        b_hid = jnp.zeros((0, num_neurons, 1), dtype)

    w_out, b_out = linear(next(ki), next(ki), num_neurons, out_features)
    return (w_in, b_in, w_hid, b_hid, w_out, b_out)


# Pure-JAX reference for correctness checking (standard (B, F) layout).
def mlp_reference(x, params):
    w_in, b_in, w_hid, b_hid, w_out, b_out = params
    h = jnp.tanh(x @ w_in.T + b_in[:, 0])
    for i in range(w_hid.shape[0]):
        h = jnp.tanh(h @ w_hid[i].T + b_hid[i, :, 0])
    return h @ w_out.T + b_out[:, 0]


if __name__ == "__main__":
    # Burgers map.py MLP: in_features=2 (x, t), out_features=1 (u),
    # num_layers=4, num_neurons=32; N=1000 collocation points (non-multiple of
    # the tile, exercising the padding path; grid=(2,) at tile=512).
    in_features, out_features = 2, 1
    num_layers, num_neurons = 4, 32
    batch = 1000

    key = jax.random.PRNGKey(0)
    k_params, k_x, k_params2, k_x2 = jax.random.split(key, 4)

    params = init_mlp_params(k_params, in_features, out_features,
                             num_layers, num_neurons)
    x = jax.random.uniform(k_x, (batch, in_features), jnp.float32, -1.0, 1.0)

    fwd = jax.jit(functools.partial(mlp_forward, batch_tile=512))
    out = jax.block_until_ready(fwd(x, params))

    ref = mlp_reference(x, params)
    assert out.shape == (batch, out_features)
    assert jnp.allclose(out, ref, atol=1e-5, rtol=1e-5), "mismatch vs reference"

    # num_layers == 1 (no hidden layers) path.
    params2 = init_mlp_params(k_params2, in_features, out_features, 1, num_neurons)
    x2 = jax.random.uniform(k_x2, (100, in_features), jnp.float32, -1.0, 1.0)
    out2 = jax.block_until_ready(jax.jit(mlp_forward)(x2, params2))
    ref2 = mlp_reference(x2, params2)
    assert out2.shape == (100, out_features)
    assert jnp.allclose(out2, ref2, atol=1e-5, rtol=1e-5), "mismatch (no hidden)"

    print("KERNEL_OK")
</pallas_src>

<mosaic_0001>
module attributes {stable_mosaic.version = 11 : i64} {
  func.func @_mlp_kernel(%arg0: i32, %arg1: memref<2x512xf32, #tpu.memory_space<vmem>>, %arg2: memref<32x2xf32, #tpu.memory_space<vmem>>, %arg3: memref<32x1xf32, #tpu.memory_space<vmem>>, %arg4: memref<3x32x32xf32, #tpu.memory_space<vmem>>, %arg5: memref<3x32x1xf32, #tpu.memory_space<vmem>>, %arg6: memref<1x32xf32, #tpu.memory_space<vmem>>, %arg7: memref<1x1xf32, #tpu.memory_space<vmem>>, %arg8: memref<1x512xf32, #tpu.memory_space<vmem>>) attributes {dimension_semantics = [#tpu.dimension_semantics<parallel>], iteration_bounds = array<i64: 2>, scalar_prefetch = 0 : i64, scratch_operands = 0 : i64, tpu.core_type = #tpu.core_type<tc>, window_params = [{transform_indices = @transform_0, window_bounds = array<i64: 2, 512>}, {pipeline_mode = #tpu.pipeline_mode<synchronous>, transform_indices = @transform_1, window_bounds = array<i64: 32, 2>}, {pipeline_mode = #tpu.pipeline_mode<synchronous>, transform_indices = @transform_2, window_bounds = array<i64: 32, 1>}, {pipeline_mode = #tpu.pipeline_mode<synchronous>, transform_indices = @transform_3, window_bounds = array<i64: 3, 32, 32>}, {pipeline_mode = #tpu.pipeline_mode<synchronous>, transform_indices = @transform_4, window_bounds = array<i64: 3, 32, 1>}, {pipeline_mode = #tpu.pipeline_mode<synchronous>, transform_indices = @transform_5, window_bounds = array<i64: 1, 32>}, {pipeline_mode = #tpu.pipeline_mode<synchronous>, transform_indices = @transform_6, window_bounds = array<i64: 1, 1>}, {transform_indices = @transform_7, window_bounds = array<i64: 1, 512>}]} {
    %c0 = arith.constant 0 : index
    %c0_0 = arith.constant 0 : index
    %0 = vector.load %arg2[%c0, %c0_0] : memref<32x2xf32, #tpu.memory_space<vmem>>, vector<32x2xf32>
    %c0_1 = arith.constant 0 : index
    %c0_2 = arith.constant 0 : index
    %1 = vector.load %arg3[%c0_1, %c0_2] : memref<32x1xf32, #tpu.memory_space<vmem>>, vector<32x1xf32>
    %c0_3 = arith.constant 0 : index
    %c0_4 = arith.constant 0 : index
    %2 = vector.load %arg1[%c0_3, %c0_4] : memref<2x512xf32, #tpu.memory_space<vmem>>, vector<2x512xf32>
    %cst = arith.constant dense<0.000000e+00> : vector<32x512xf32>
    %3 = tpu.matmul %0, %2, %cst {dimension_numbers = #tpu.dot_dimension_numbers<[1], [0], [0], [1], [0, 0, 1, 1], [], []>} : vector<32x2xf32>, vector<2x512xf32>, vector<32x512xf32> -> vector<32x512xf32>
    %4 = vector.broadcast %1 : vector<32x1xf32> to vector<32x512xf32>
    %5 = arith.addf %3, %4 : vector<32x512xf32>
    %6 = math.tanh %5 : vector<32x512xf32>
    %c0_5 = arith.constant 0 : index
    %c0_6 = arith.constant 0 : index
    %c0_7 = arith.constant 0 : index
    %7 = vector.load %arg4[%c0_5, %c0_6, %c0_7] : memref<3x32x32xf32, #tpu.memory_space<vmem>>, vector<1x32x32xf32>
    %8 = vector.shape_cast %7 : vector<1x32x32xf32> to vector<32x32xf32>
    %c0_8 = arith.constant 0 : index
    %c0_9 = arith.constant 0 : index
    %c0_10 = arith.constant 0 : index
    %9 = vector.load %arg5[%c0_8, %c0_9, %c0_10] : memref<3x32x1xf32, #tpu.memory_space<vmem>>, vector<1x32x1xf32>
    %10 = vector.shape_cast %9 : vector<1x32x1xf32> to vector<32x1xf32>
    %cst_11 = arith.constant dense<0.000000e+00> : vector<32x512xf32>
    %11 = tpu.matmul %8, %6, %cst_11 {dimension_numbers = #tpu.dot_dimension_numbers<[1], [0], [0], [1], [0, 0, 1, 1], [], []>} : vector<32x32xf32>, vector<32x512xf32>, vector<32x512xf32> -> vector<32x512xf32>
    %12 = vector.broadcast %10 : vector<32x1xf32> to vector<32x512xf32>
    %13 = arith.addf %11, %12 : vector<32x512xf32>
    %14 = math.tanh %13 : vector<32x512xf32>
    %c1 = arith.constant 1 : index
    %c0_12 = arith.constant 0 : index
    %c0_13 = arith.constant 0 : index
    %15 = vector.load %arg4[%c1, %c0_12, %c0_13] : memref<3x32x32xf32, #tpu.memory_space<vmem>>, vector<1x32x32xf32>
    %16 = vector.shape_cast %15 : vector<1x32x32xf32> to vector<32x32xf32>
    %c1_14 = arith.constant 1 : index
    %c0_15 = arith.constant 0 : index
    %c0_16 = arith.constant 0 : index
    %17 = vector.load %arg5[%c1_14, %c0_15, %c0_16] : memref<3x32x1xf32, #tpu.memory_space<vmem>>, vector<1x32x1xf32>
    %18 = vector.shape_cast %17 : vector<1x32x1xf32> to vector<32x1xf32>
    %cst_17 = arith.constant dense<0.000000e+00> : vector<32x512xf32>
    %19 = tpu.matmul %16, %14, %cst_17 {dimension_numbers = #tpu.dot_dimension_numbers<[1], [0], [0], [1], [0, 0, 1, 1], [], []>} : vector<32x32xf32>, vector<32x512xf32>, vector<32x512xf32> -> vector<32x512xf32>
    %20 = vector.broadcast %18 : vector<32x1xf32> to vector<32x512xf32>
    %21 = arith.addf %19, %20 : vector<32x512xf32>
    %22 = math.tanh %21 : vector<32x512xf32>
    %c2 = arith.constant 2 : index
    %c0_18 = arith.constant 0 : index
    %c0_19 = arith.constant 0 : index
    %23 = vector.load %arg4[%c2, %c0_18, %c0_19] : memref<3x32x32xf32, #tpu.memory_space<vmem>>, vector<1x32x32xf32>
    %24 = vector.shape_cast %23 : vector<1x32x32xf32> to vector<32x32xf32>
    %c2_20 = arith.constant 2 : index
    %c0_21 = arith.constant 0 : index
    %c0_22 = arith.constant 0 : index
    %25 = vector.load %arg5[%c2_20, %c0_21, %c0_22] : memref<3x32x1xf32, #tpu.memory_space<vmem>>, vector<1x32x1xf32>
    %26 = vector.shape_cast %25 : vector<1x32x1xf32> to vector<32x1xf32>
    %cst_23 = arith.constant dense<0.000000e+00> : vector<32x512xf32>
    %27 = tpu.matmul %24, %22, %cst_23 {dimension_numbers = #tpu.dot_dimension_numbers<[1], [0], [0], [1], [0, 0, 1, 1], [], []>} : vector<32x32xf32>, vector<32x512xf32>, vector<32x512xf32> -> vector<32x512xf32>
    %28 = vector.broadcast %26 : vector<32x1xf32> to vector<32x512xf32>
    %29 = arith.addf %27, %28 : vector<32x512xf32>
    %30 = math.tanh %29 : vector<32x512xf32>
    %c0_24 = arith.constant 0 : index
    %c0_25 = arith.constant 0 : index
    %31 = vector.load %arg6[%c0_24, %c0_25] : memref<1x32xf32, #tpu.memory_space<vmem>>, vector<1x32xf32>
    %cst_26 = arith.constant dense<0.000000e+00> : vector<1x512xf32>
    %32 = tpu.matmul %31, %30, %cst_26 {dimension_numbers = #tpu.dot_dimension_numbers<[1], [0], [0], [1], [0, 0, 1, 1], [], []>} : vector<1x32xf32>, vector<32x512xf32>, vector<1x512xf32> -> vector<1x512xf32>
    %c0_27 = arith.constant 0 : index
    %c0_28 = arith.constant 0 : index
    %33 = vector.load %arg7[%c0_27, %c0_28] : memref<1x1xf32, #tpu.memory_space<vmem>>, vector<1x1xf32>
    %34 = vector.broadcast %33 : vector<1x1xf32> to vector<1x512xf32>
    %35 = arith.addf %32, %34 : vector<1x512xf32>
    %c0_29 = arith.constant 0 : index
    %c0_30 = arith.constant 0 : index
    %36 = vector.load %arg8[%c0_29, %c0_30] : memref<1x512xf32, #tpu.memory_space<vmem>>, vector<1x512xf32>
    tpu.vector_store %arg8[%c0_29, %c0_30], %35 {strides = array<i32>} : memref<1x512xf32, #tpu.memory_space<vmem>>, vector<1x512xf32>,
    return
  }
  func.func @transform_0(%arg0: i32) -> (i32, i32) {
    %c0_i32 = arith.constant 0 : i32
    %c0_i32_0 = arith.constant 0 : i32
    return %c0_i32, %arg0 : i32, i32
  }
  func.func @transform_1(%arg0: i32) -> (i32, i32) {
    %c0_i32 = arith.constant 0 : i32
    %c0_i32_0 = arith.constant 0 : i32
    %c0_i32_1 = arith.constant 0 : i32
    return %c0_i32, %c0_i32_0 : i32, i32
  }
  func.func @transform_2(%arg0: i32) -> (i32, i32) {
    %c0_i32 = arith.constant 0 : i32
    %c0_i32_0 = arith.constant 0 : i32
    %c0_i32_1 = arith.constant 0 : i32
    return %c0_i32, %c0_i32_0 : i32, i32
  }
  func.func @transform_3(%arg0: i32) -> (i32, i32, i32) {
    %c0_i32 = arith.constant 0 : i32
    %c0_i32_0 = arith.constant 0 : i32
    %c0_i32_1 = arith.constant 0 : i32
    %c0_i32_2 = arith.constant 0 : i32
    return %c0_i32, %c0_i32_0, %c0_i32_1 : i32, i32, i32
  }
  func.func @transform_4(%arg0: i32) -> (i32, i32, i32) {
    %c0_i32 = arith.constant 0 : i32
    %c0_i32_0 = arith.constant 0 : i32
    %c0_i32_1 = arith.constant 0 : i32
    %c0_i32_2 = arith.constant 0 : i32
    return %c0_i32, %c0_i32_0, %c0_i32_1 : i32, i32, i32
  }
  func.func @transform_5(%arg0: i32) -> (i32, i32) {
    %c0_i32 = arith.constant 0 : i32
    %c0_i32_0 = arith.constant 0 : i32
    %c0_i32_1 = arith.constant 0 : i32
    return %c0_i32, %c0_i32_0 : i32, i32
  }
  func.func @transform_6(%arg0: i32) -> (i32, i32) {
    %c0_i32 = arith.constant 0 : i32
    %c0_i32_0 = arith.constant 0 : i32
    %c0_i32_1 = arith.constant 0 : i32
    return %c0_i32, %c0_i32_0 : i32, i32
  }
  func.func @transform_7(%arg0: i32) -> (i32, i32) {
    %c0_i32 = arith.constant 0 : i32
    %c0_i32_0 = arith.constant 0 : i32
    return %c0_i32, %arg0 : i32, i32
  }
}

</mosaic_0001>

<llo_original>
// kernel: mlp_forward.1
$region0: #{mlp_forward.1}
  #allocation0 [shape = 'u32[]', space=smem, size = 0x4, offset = 0x4, fixed_abs, tag = 'smem constant byte address 0x4 - core index']
  #allocation1 [shape = 'u32[144,128]{1,0:T(1,128)}', space=vmem, size = 0x12000, scoped, tag = 'internal scratch']
  #allocation2 [shape = 'f32[1,1]{1,0:T(1,128)S(1)}', space=vmem, size = 0x200, scoped, tag = 'scoped memory for mlp_forward.1']
  %s0 = inlined_call_operand.vmem [shape: f32[2,1024], index: 0, kind: input, shape index: {}]
  %s1 = inlined_call_operand.vmem [shape: f32[32,2], index: 1, kind: input, shape index: {}]
  %s2 = inlined_call_operand.vmem [shape: f32[32,1], index: 2, kind: input, shape index: {}]
  %s3 = inlined_call_operand.vmem [shape: f32[3,32,32], index: 3, kind: input, shape index: {}]
  %s4 = inlined_call_operand.vmem [shape: f32[3,32,1], index: 4, kind: input, shape index: {}]
  %s5 = inlined_call_operand.vmem [shape: f32[1,32], index: 5, kind: input, shape index: {}]
  %s6 = inlined_call_operand.<no memory space> [shape: f32[1,1], index: 6, kind: input, shape index: {}]
  %s7 = inlined_call_operand.vmem [shape: f32[1,1024], index: 7, kind: output, shape index: {}]
  %s8 = sld [smem:[#allocation0]]
  $region61: #{mlp_forward.1} parent=0
    _
  %s10 = ssub.s32 1, %s8
  %s11 = scalar_select 0, %s10, %s8
  %v12 = vstv %s6
  %13 = vst [vmem:[#allocation2] sm:$0x1] %v12
  loop: start=0, step=1, limit=4
  $region2: #{mlp_forward.1} parent=0 // loop_pre_header
    _
  $region3: #{mlp_forward.1} parent=0 // loop_header
    %s15 = sphi 0, %s19
    %p16 = scmp.ge.s32.totalorder %s15, 4
    %s25 = sphi 0, %s27
    %s28 = sphi 0, %s25
    %s29 = sphi 0, %s28
    %s45 = sphi 0, %s29
    %s49 = sphi 0, %s49
    %s51 = sphi 0, %s49
    %s52 = sphi 0, %s51
    %s66 = sphi 0, %s52
    %s70 = sphi 0, %s70
    %s72 = sphi 0, %s70
    %s73 = sphi 0, %s72
    %s87 = sphi 0, %s73
    %s91 = sphi 0, %s91
    %s93 = sphi 0, %s91
    %s94 = sphi 0, %s93
    %s108 = sphi 0, %s94
    %s112 = sphi 0, %s112
    %s114 = sphi 0, %s112
    %s115 = sphi 0, %s114
    %s129 = sphi 0, %s115
    %s133 = sphi 0, %s133
    %s135 = sphi 0, %s133
    %s136 = sphi 0, %s135
    %s150 = sphi 0, %s136
    %s154 = sphi 0, %s154
    %s156 = sphi 0, %s154
    %s157 = sphi 0, %s156
    %s171 = sphi 0, %s157
    %s177 = sphi 0, %s179
    %s180 = sphi 0, %s177
    %s181 = sphi 0, %s180
    %s197 = sphi 0, %s181
  $region4: #{mlp_forward.1} parent=0 // loop_header_branch
    %18 = sbr.rel (%p16) target = $region8
  $region5: #{mlp_forward.1} parent=0 // loop_body
    %s20 = ssub.s32 %s15, 1
    %s21 = ssub.s32 %s15, 2
    %s22 = sadd.s32 %s15, 1
    %s23 = ssub.s32 %s15, %s22
    %p24 = scmp.eq.s32.totalorder %s23, 0
    %s26 = sadd.s32 %s25, 1
    %s27 = scalar_select %p24, %s25, %s26
    %p30 = pneg %p24
    %p31 = scmp.eq.s32.totalorder %s15, 1
    %p32 = por %p30, %p31
    %p33 = scmp.ne.s32.totalorder %s25, %s28
    %p34 = scmp.eq.s32.totalorder %s15, 0
    %p35 = por %p33, %p34
    %p36 = scmp.ne.s32.totalorder %s25, %s28
    %p37 = scmp.eq.s32.totalorder %s20, 1
    %p38 = por %p36, %p37
    %p39 = scmp.ne.s32.totalorder %s28, %s29
    %p40 = scmp.eq.s32.totalorder %s20, 0
    %p41 = por %p39, %p40
    %p42 = scmp.ne.s32.totalorder %s28, %s29
    %p43 = scmp.eq.s32.totalorder %s21, 1
    %p44 = por %p42, %p43
    %p46 = scmp.ne.s32.totalorder %s29, %s45
    %p47 = scmp.eq.s32.totalorder %s21, 0
    %p48 = por %p46, %p47
    %s50 = sadd.s32 %s49, 1
    %p53 = scmp.eq.s32.totalorder %s15, 1
    %p54 = scmp.ne.s32.totalorder %s49, %s51
    %p55 = scmp.eq.s32.totalorder %s15, 0
    %p56 = por %p54, %p55
    %p57 = scmp.ne.s32.totalorder %s49, %s51
    %p58 = scmp.eq.s32.totalorder %s20, 1
    %p59 = por %p57, %p58
    %p60 = scmp.ne.s32.totalorder %s51, %s52
    %p61 = scmp.eq.s32.totalorder %s20, 0
    %p62 = por %p60, %p61
    %p63 = scmp.ne.s32.totalorder %s51, %s52
    %p64 = scmp.eq.s32.totalorder %s21, 1
    %p65 = por %p63, %p64
    %p67 = scmp.ne.s32.totalorder %s52, %s66
    %p68 = scmp.eq.s32.totalorder %s21, 0
    %p69 = por %p67, %p68
    %s71 = sadd.s32 %s70, 1
    %p74 = scmp.eq.s32.totalorder %s15, 1
    %p75 = scmp.ne.s32.totalorder %s70, %s72
    %p76 = scmp.eq.s32.totalorder %s15, 0
    %p77 = por %p75, %p76
    %p78 = scmp.ne.s32.totalorder %s70, %s72
    %p79 = scmp.eq.s32.totalorder %s20, 1
    %p80 = por %p78, %p79
    %p81 = scmp.ne.s32.totalorder %s72, %s73
    %p82 = scmp.eq.s32.totalorder %s20, 0
    %p83 = por %p81, %p82
    %p84 = scmp.ne.s32.totalorder %s72, %s73
    %p85 = scmp.eq.s32.totalorder %s21, 1
    %p86 = por %p84, %p85
    %p88 = scmp.ne.s32.totalorder %s73, %s87
    %p89 = scmp.eq.s32.totalorder %s21, 0
    %p90 = por %p88, %p89
    %s92 = sadd.s32 %s91, 1
    %p95 = scmp.eq.s32.totalorder %s15, 1
    %p96 = scmp.ne.s32.totalorder %s91, %s93
    %p97 = scmp.eq.s32.totalorder %s15, 0
    %p98 = por %p96, %p97
    %p99 = scmp.ne.s32.totalorder %s91, %s93
    %p100 = scmp.eq.s32.totalorder %s20, 1
    %p101 = por %p99, %p100
    %p102 = scmp.ne.s32.totalorder %s93, %s94
    %p103 = scmp.eq.s32.totalorder %s20, 0
    %p104 = por %p102, %p103
    %p105 = scmp.ne.s32.totalorder %s93, %s94
    %p106 = scmp.eq.s32.totalorder %s21, 1
    %p107 = por %p105, %p106
    %p109 = scmp.ne.s32.totalorder %s94, %s108
    %p110 = scmp.eq.s32.totalorder %s21, 0
    %p111 = por %p109, %p110
    %s113 = sadd.s32 %s112, 1
    %p116 = scmp.eq.s32.totalorder %s15, 1
    %p117 = scmp.ne.s32.totalorder %s112, %s114
    %p118 = scmp.eq.s32.totalorder %s15, 0
    %p119 = por %p117, %p118
    %p120 = scmp.ne.s32.totalorder %s112, %s114
    %p121 = scmp.eq.s32.totalorder %s20, 1
    %p122 = por %p120, %p121
    %p123 = scmp.ne.s32.totalorder %s114, %s115
    %p124 = scmp.eq.s32.totalorder %s20, 0
    %p125 = por %p123, %p124
    %p126 = scmp.ne.s32.totalorder %s114, %s115
    %p127 = scmp.eq.s32.totalorder %s21, 1
    %p128 = por %p126, %p127
    %p130 = scmp.ne.s32.totalorder %s115, %s129
    %p131 = scmp.eq.s32.totalorder %s21, 0
    %p132 = por %p130, %p131
    %s134 = sadd.s32 %s133, 1
    %p137 = scmp.eq.s32.totalorder %s15, 1
    %p138 = scmp.ne.s32.totalorder %s133, %s135
    %p139 = scmp.eq.s32.totalorder %s15, 0
    %p140 = por %p138, %p139
    %p141 = scmp.ne.s32.totalorder %s133, %s135
    %p142 = scmp.eq.s32.totalorder %s20, 1
    %p143 = por %p141, %p142
    %p144 = scmp.ne.s32.totalorder %s135, %s136
    %p145 = scmp.eq.s32.totalorder %s20, 0
    %p146 = por %p144, %p145
    %p147 = scmp.ne.s32.totalorder %s135, %s136
    %p148 = scmp.eq.s32.totalorder %s21, 1
    %p149 = por %p147, %p148
    %p151 = scmp.ne.s32.totalorder %s136, %s150
    %p152 = scmp.eq.s32.totalorder %s21, 0
    %p153 = por %p151, %p152
    %s155 = sadd.s32 %s154, 1
    %p158 = scmp.eq.s32.totalorder %s15, 1
    %p159 = scmp.ne.s32.totalorder %s154, %s156
    %p160 = scmp.eq.s32.totalorder %s15, 0
    %p161 = por %p159, %p160
    %p162 = scmp.ne.s32.totalorder %s154, %s156
    %p163 = scmp.eq.s32.totalorder %s20, 1
    %p164 = por %p162, %p163
    %p165 = scmp.ne.s32.totalorder %s156, %s157
    %p166 = scmp.eq.s32.totalorder %s20, 0
    %p167 = por %p165, %p166
    %p168 = scmp.ne.s32.totalorder %s156, %s157
    %p169 = scmp.eq.s32.totalorder %s21, 1
    %p170 = por %p168, %p169
    %p172 = scmp.ne.s32.totalorder %s157, %s171
    %p173 = scmp.eq.s32.totalorder %s21, 0
    %p174 = por %p172, %p173
    %s175 = ssub.s32 %s15, %s22
    %p176 = scmp.eq.s32.totalorder %s175, 0
    %s178 = sadd.s32 %s177, 1
    %s179 = scalar_select %p176, %s177, %s178
    %p182 = pneg %p176
    %p183 = scmp.eq.s32.totalorder %s15, 1
    %p184 = por %p182, %p183
    %p185 = scmp.ne.s32.totalorder %s177, %s180
    %p186 = scmp.eq.s32.totalorder %s15, 0
    %p187 = por %p185, %p186
    %p188 = scmp.ne.s32.totalorder %s177, %s180
    %p189 = scmp.eq.s32.totalorder %s20, 1
    %p190 = por %p188, %p189
    %p191 = scmp.ne.s32.totalorder %s180, %s181
    %p192 = scmp.eq.s32.totalorder %s20, 0
    %p193 = por %p191, %p192
    %p194 = scmp.ne.s32.totalorder %s180, %s181
    %p195 = scmp.eq.s32.totalorder %s21, 1
    %p196 = por %p194, %p195
    %p198 = scmp.ne.s32.totalorder %s181, %s197
    %p199 = scmp.eq.s32.totalorder %s21, 0
    %p200 = por %p198, %p199
    %p201 = scmp.le.s32.totalorder 1, %s15
    %p202 = scmp.lt.s32.totalorder %s15, 3
    %p203 = pnand %p201, %p202
    %p204 = pneg %p203
    // Predicated region
    $region9: #{mlp_forward.1} parent=5 // pred_check
      _
    $region10: #{mlp_forward.1} parent=5 // pred_check_branch
      %206 = sbr.rel (%p203) target = $region12
    $region11: #{mlp_forward.1} parent=5 // pred_region
      %s207 = ssub.s32 %s15, 1
      // Predicated region
      $region13: #{mlp_forward.1} parent=11 // pred_check
        %p208 = pneg %p62
      $region14: #{mlp_forward.1} parent=11 // pred_check_branch
        %210 = sbr.rel (%p208) target = $region16
      $region15: #{mlp_forward.1} parent=11 // pred_region
        _
      $region16: #{mlp_forward.1} parent=11 // pred_fallthru
        _
      // Predicated region
      $region17: #{mlp_forward.1} parent=11 // pred_check
        %p211 = pneg %p83
      $region18: #{mlp_forward.1} parent=11 // pred_check_branch
        %213 = sbr.rel (%p211) target = $region20
      $region19: #{mlp_forward.1} parent=11 // pred_region
        _
      $region20: #{mlp_forward.1} parent=11 // pred_fallthru
        _
      // Predicated region
      $region21: #{mlp_forward.1} parent=11 // pred_check
        %p214 = pneg %p104
      $region22: #{mlp_forward.1} parent=11 // pred_check_branch
        %216 = sbr.rel (%p214) target = $region24
      $region23: #{mlp_forward.1} parent=11 // pred_region
        _
      $region24: #{mlp_forward.1} parent=11 // pred_fallthru
        _
      // Predicated region
      $region25: #{mlp_forward.1} parent=11 // pred_check
        %p217 = pneg %p125
      $region26: #{mlp_forward.1} parent=11 // pred_check_branch
        %219 = sbr.rel (%p217) target = $region28
      $region27: #{mlp_forward.1} parent=11 // pred_region
        _
      $region28: #{mlp_forward.1} parent=11 // pred_fallthru
        _
      // Predicated region
      $region29: #{mlp_forward.1} parent=11 // pred_check
        %p220 = pneg %p146
      $region30: #{mlp_forward.1} parent=11 // pred_check_branch
        %222 = sbr.rel (%p220) target = $region32
      $region31: #{mlp_forward.1} parent=11 // pred_region
        _
      $region32: #{mlp_forward.1} parent=11 // pred_fallthru
        _
      // Predicated region
      $region33: #{mlp_forward.1} parent=11 // pred_check
        %p223 = pneg %p167
      $region34: #{mlp_forward.1} parent=11 // pred_check_branch
        %225 = sbr.rel (%p223) target = $region36
      $region35: #{mlp_forward.1} parent=11 // pred_region
        _
      $region36: #{mlp_forward.1} parent=11 // pred_fallthru
        _
    $region12: #{mlp_forward.1} parent=5 // pred_fallthru
      _
    %p226 = scmp.lt.s32.totalorder %s15, 2
    // Predicated region
    $region37: #{mlp_forward.1} parent=5 // pred_check
      %p227 = pneg %p226
    $region38: #{mlp_forward.1} parent=5 // pred_check_branch
      %229 = sbr.rel (%p227) target = $region40
    $region39: #{mlp_forward.1} parent=5 // pred_region
      // Predicated region
      $region41: #{mlp_forward.1} parent=39 // pred_check
        %p230 = pneg %p35
      $region42: #{mlp_forward.1} parent=39 // pred_check_branch
        %232 = sbr.rel (%p230) target = $region44
      $region43: #{mlp_forward.1} parent=39 // pred_region
        %s233 = smul.u32 4, %s15
        %p234 = scmp.lt.s32.totalorder %s233, 7
        %s235 = scalar_select %p234, %s233, 7
        %s236 = smul.addr %s235, 2
        %s237 = scalar_lea.vmem %s0, %s236
        %s238 = smul.u32 4, %s15
      $region44: #{mlp_forward.1} parent=39 // pred_fallthru
        _
    $region40: #{mlp_forward.1} parent=5 // pred_fallthru
      _
    %p239 = scmp.le.s32.totalorder 1, %s15
    %p240 = scmp.lt.s32.totalorder %s15, 3
    %p241 = pnand %p239, %p240
    %p242 = pneg %p241
    // Predicated region
    $region45: #{mlp_forward.1} parent=5 // pred_check
      _
    $region46: #{mlp_forward.1} parent=5 // pred_check_branch
      %244 = sbr.rel (%p241) target = $region48
    $region47: #{mlp_forward.1} parent=5 // pred_region
      %s245 = ssub.s32 %s15, 1
      %s246 = smul.u32 4, %s20
      %p247 = scmp.lt.s32.totalorder %s246, 7
      %s248 = scalar_select %p247, %s246, 7
      %s249 = smul.addr %s248, 2
      %s250 = scalar_lea.vmem %s0, %s249
      %p251 = pneg %p41
      %p252 = pneg %p38
      %p253 = pneg %p62
      %p254 = pneg %p59
      %p255 = pneg %p83
      %p256 = pneg %p80
      %p257 = pneg %p104
      %p258 = pneg %p101
      %p259 = pneg %p125
      %p260 = pneg %p122
      %p261 = pneg %p146
      %p262 = pneg %p143
      %p263 = pneg %p167
      %p264 = pneg %p164
      %p265 = pneg %p193
      %p266 = pneg %p190
      %s267 = smul.u32 4, %s20
      %p268 = scmp.lt.s32.totalorder %s267, 7
      %s269 = scalar_select %p268, %s267, 7
      %s270 = scalar_lea.vmem %s7, %s269
      %s271 = smul.u32 4, %s20
      %p272 = scmp.lt.s32.totalorder %s271, 7
      %s273 = scalar_select %p272, %s271, 7
      %s274 = smul.addr %s273, 2
      %s275 = scalar_lea.vmem %s0, %s274
      %s276 = smul.u32 4, %s20
      %s277 = smul.u32 4, %s20
      %p278 = scmp.lt.s32.totalorder %s277, 7
      %s279 = scalar_select %p278, %s277, 7
      %s280 = scalar_lea.vmem %s7, %s279
      %s281 = smul.u32 4, %s20
      %v282 = vld [vmem:[%s1] sm:$0xff]
      %v283 = vld [vmem:[%s1 + $0x8] sm:$0xff]
      %v284 = vld [vmem:[%s1 + $0x10] sm:$0xff]
      %v285 = vld [vmem:[%s1 + $0x18] sm:$0xff]
      %v286 = vld [vmem:[%s2] sm:$0xff]
      %v287 = vld [vmem:[%s2 + $0x8] sm:$0xff]
      %v288 = vld [vmem:[%s2 + $0x10] sm:$0xff]
      %v289 = vld [vmem:[%s2 + $0x18] sm:$0xff]
      %v290 = vld [vmem:[%s275] sm:$0xff]
      %292 = vset.pattern.permute.xlu0 0
      %293 = vperm.xlu0 %292, %v286
      %v294 = vpop.permute.xlu0 %293
      %297 = vset.pattern.permute.xlu0 0
      %298 = vperm.xlu0 %297, %v287
      %v299 = vpop.permute.xlu0 %298
      %302 = vset.pattern.permute.xlu0 0
      %303 = vperm.xlu0 %302, %v288
      %v304 = vpop.permute.xlu0 %303
      %307 = vset.pattern.permute.xlu0 0
      %308 = vperm.xlu0 %307, %v289
      %v309 = vpop.permute.xlu0 %308
      %v312 = vcombine.high %v290, %v290
      %v314 = vunpack.c.l.s4 1983009808
      %v315 = vunpack.c.0.s8 %v314
      %v316 = vlaneseq
      %v317 = vshrl.u32 %v316, 7
      %v318 = vsub.s32 %v315, %v317
      %v319 = vrot.slane %v290, %v318
      %v321 = vunpack.c.l.s4 1983009808
      %v322 = vunpack.c.0.s8 %v321
      %v323 = vlaneseq
      %v324 = vshrl.u32 %v323, 7
      %v325 = vsub.s32 %v322, %v324
      %v326 = vrot.slane %v312, %v325
      %v327 = vcombine.high %v319, %v319
      %v328 = vcombine.high %v326, %v326
      %vm329 = vcmask 15360
      %v331 = vsel %vm329, %v282, 0
      %v334 = vsel %vm329, %v283, 0
      %v337 = vsel %vm329, %v284, 0
      %v340 = vsel %vm329, %v285, 0
      %vm342 = vcmask 1041408
      %v343 = vsel %vm342, %v319, 0
      %v345 = vsel %vm342, %v327, 0
      %v347 = vsel %vm342, %v326, 0
      %v349 = vsel %vm342, %v328, 0
      %351 = vmatprep.subr.mxu0 %v345
      %352 = vmatpush1.msra.mxu0 %v343
      %353 = vmatprep.subr.mxu0 0.0
      %354 = vmatpush1.msra.mxu0 0.0
      %355 = vmatprep.subr.mxu0 0.0
      %356 = vmatpush1.msra.mxu0 0.0
      %357 = vmatprep.subr.mxu0 0.0
      %358 = vmatpush1.msra.mxu0 0.0
      %359 = vmatprep.subr.mxu0 0.0
      %360 = vmatpush1.msra.mxu0 0.0
      %361 = vmatprep.subr.mxu0 0.0
      %362 = vmatpush1.msra.mxu0 0.0
      %363 = vmatprep.subr.mxu0 0.0
      %364 = vmatpush1.msra.mxu0 0.0
      %365 = vmatprep.subr.mxu0 0.0
      %366 = vmatpush1.msra.mxu0 0.0
      %367 = vmatprep.subr.mxu0 0.0
      %368 = vmatpush1.msra.mxu0 0.0
      %369 = vmatprep.subr.mxu0 0.0
      %370 = vmatpush1.msra.mxu0 0.0
      %371 = vmatprep.subr.mxu0 0.0
      %372 = vmatpush1.msra.mxu0 0.0
      %373 = vmatprep.subr.mxu0 0.0
      %374 = vmatpush1.msra.mxu0 0.0
      %375 = vmatprep.subr.mxu0 0.0
      %376 = vmatpush1.msra.mxu0 0.0
      %377 = vmatprep.subr.mxu0 0.0
      %378 = vmatpush1.msra.mxu0 0.0
      %379 = vmatprep.subr.mxu0 0.0
      %380 = vmatpush1.msra.mxu0 0.0
      %381 = vmatprep.subr.mxu0 0.0
      %382 = vmatpush1.msra.mxu0 0.0
      %383 = vmatprep.subr.mxu0 0.0
      %384 = vmatpush1.msra.mxu0 0.0
      %385 = vmatprep.subr.mxu0 0.0
      %386 = vmatpush1.msra.mxu0 0.0
      %387 = vmatprep.subr.mxu0 0.0
      %388 = vmatpush1.msra.mxu0 0.0
      %389 = vmatprep.subr.mxu0 0.0
      %390 = vmatpush1.msra.mxu0 0.0
      %391 = vmatprep.subr.mxu0 0.0
      %392 = vmatpush1.msra.mxu0 0.0
      %393 = vmatprep.subr.mxu0 0.0
      %394 = vmatpush1.msra.mxu0 0.0
      %395 = vmatprep.subr.mxu0 0.0
      %396 = vmatpush1.msra.mxu0 0.0
      %397 = vmatprep.subr.mxu0 0.0
      %398 = vmatpush1.msra.mxu0 0.0
      %399 = vmatprep.subr.mxu0 0.0
      %400 = vmatpush1.msra.mxu0 0.0
      %401 = vmatprep.subr.mxu0 0.0
      %402 = vmatpush1.msra.mxu0 0.0
      %403 = vmatprep.subr.mxu0 0.0
      %404 = vmatpush1.msra.mxu0 0.0
      %405 = vmatprep.subr.mxu0 0.0
      %406 = vmatpush1.msra.mxu0 0.0
      %407 = vmatprep.subr.mxu0 0.0
      %408 = vmatpush1.msra.mxu0 0.0
      %409 = vmatprep.subr.mxu0 0.0
      %410 = vmatpush1.msra.mxu0 0.0
      %411 = vmatprep.subr.mxu0 0.0
      %412 = vmatpush1.msra.mxu0 0.0
      %413 = vmatprep.subr.mxu0 0.0
      %414 = vmatpush1.msra.mxu0 0.0
      %415 = vmatprep.mubr.f32.mxu0 0.0
      %416 = vmatmul.mubr.f32.gmra.mrb[0].mxu0 %v331
      %v417 = vpop.f32.mrb[0].mxu0
      %v418 = vadd.f32 %v294, %v417
      %v419 = vpop.f32.mrb[0].mxu0
      %v420 = vadd.f32 %v294, %v419
      %421 = vmatprep.mubr.f32.mxu0 0.0
      %422 = vmatmul.mubr.f32.gmra.mrb[0].mxu0 %v334
      %v423 = vpop.f32.mrb[0].mxu0
      %v424 = vadd.f32 %v299, %v423
      %v425 = vpop.f32.mrb[0].mxu0
      %v426 = vadd.f32 %v299, %v425
      %427 = vmatprep.mubr.f32.mxu0 0.0
      %428 = vmatmul.mubr.f32.gmra.mrb[0].mxu0 %v337
      %v429 = vpop.f32.mrb[0].mxu0
      %v430 = vadd.f32 %v304, %v429
      %v431 = vpop.f32.mrb[0].mxu0
      %v432 = vadd.f32 %v304, %v431
      %433 = vmatprep.mubr.f32.mxu0 0.0
      %434 = vmatmul.mubr.f32.gmra.mrb[0].mxu0 %v340
      %v435 = vpop.f32.mrb[0].mxu0
      %v436 = vadd.f32 %v309, %v435
      %v437 = vpop.f32.mrb[0].mxu0
      %v438 = vadd.f32 %v309, %v437
      %439 = vdwg.mxu0
      %440 = vmatprep.subr.mxu0 %v349
      %441 = vmatpush1.msra.mxu0 %v347
      %442 = vmatprep.subr.mxu0 0.0
      %443 = vmatpush1.msra.mxu0 0.0
      %444 = vmatprep.subr.mxu0 0.0
      %445 = vmatpush1.msra.mxu0 0.0
      %446 = vmatprep.subr.mxu0 0.0
      %447 = vmatpush1.msra.mxu0 0.0
      %448 = vmatprep.subr.mxu0 0.0
      %449 = vmatpush1.msra.mxu0 0.0
      %450 = vmatprep.subr.mxu0 0.0
      %451 = vmatpush1.msra.mxu0 0.0
      %452 = vmatprep.subr.mxu0 0.0
      %453 = vmatpush1.msra.mxu0 0.0
      %454 = vmatprep.subr.mxu0 0.0
      %455 = vmatpush1.msra.mxu0 0.0
      %456 = vmatprep.subr.mxu0 0.0
      %457 = vmatpush1.msra.mxu0 0.0
      %458 = vmatprep.subr.mxu0 0.0
      %459 = vmatpush1.msra.mxu0 0.0
      %460 = vmatprep.subr.mxu0 0.0
      %461 = vmatpush1.msra.mxu0 0.0
      %462 = vmatprep.subr.mxu0 0.0
      %463 = vmatpush1.msra.mxu0 0.0
      %464 = vmatprep.subr.mxu0 0.0
      %465 = vmatpush1.msra.mxu0 0.0
      %466 = vmatprep.subr.mxu0 0.0
      %467 = vmatpush1.msra.mxu0 0.0
      %468 = vmatprep.subr.mxu0 0.0
      %469 = vmatpush1.msra.mxu0 0.0
      %470 = vmatprep.subr.mxu0 0.0
      %471 = vmatpush1.msra.mxu0 0.0
      %472 = vmatprep.subr.mxu0 0.0
      %473 = vmatpush1.msra.mxu0 0.0
      %474 = vmatprep.subr.mxu0 0.0
      %475 = vmatpush1.msra.mxu0 0.0
      %476 = vmatprep.subr.mxu0 0.0
      %477 = vmatpush1.msra.mxu0 0.0
      %478 = vmatprep.subr.mxu0 0.0
      %479 = vmatpush1.msra.mxu0 0.0
      %480 = vmatprep.subr.mxu0 0.0
      %481 = vmatpush1.msra.mxu0 0.0
      %482 = vmatprep.subr.mxu0 0.0
      %483 = vmatpush1.msra.mxu0 0.0
      %484 = vmatprep.subr.mxu0 0.0
      %485 = vmatpush1.msra.mxu0 0.0
      %486 = vmatprep.subr.mxu0 0.0
      %487 = vmatpush1.msra.mxu0 0.0
      %488 = vmatprep.subr.mxu0 0.0
      %489 = vmatpush1.msra.mxu0 0.0
      %490 = vmatprep.subr.mxu0 0.0
      %491 = vmatpush1.msra.mxu0 0.0
      %492 = vmatprep.subr.mxu0 0.0
      %493 = vmatpush1.msra.mxu0 0.0
      %494 = vmatprep.subr.mxu0 0.0
      %495 = vmatpush1.msra.mxu0 0.0
      %496 = vmatprep.subr.mxu0 0.0
      %497 = vmatpush1.msra.mxu0 0.0
      %498 = vmatprep.subr.mxu0 0.0
      %499 = vmatpush1.msra.mxu0 0.0
      %500 = vmatprep.subr.mxu0 0.0
      %501 = vmatpush1.msra.mxu0 0.0
      %502 = vmatprep.subr.mxu0 0.0
      %503 = vmatpush1.msra.mxu0 0.0
      %504 = vmatprep.mubr.f32.mxu0 0.0
      %505 = vmatmul.mubr.f32.gmra.mrb[0].mxu0 %v331
      %v506 = vpop.f32.mrb[0].mxu0
      %v507 = vadd.f32 %v294, %v506
      %v508 = vpop.f32.mrb[0].mxu0
      %v509 = vadd.f32 %v294, %v508
      %510 = vmatprep.mubr.f32.mxu0 0.0
      %511 = vmatmul.mubr.f32.gmra.mrb[0].mxu0 %v334
      %v512 = vpop.f32.mrb[0].mxu0
      %v513 = vadd.f32 %v299, %v512
      %v514 = vpop.f32.mrb[0].mxu0
      %v515 = vadd.f32 %v299, %v514
      %516 = vmatprep.mubr.f32.mxu0 0.0
      %517 = vmatmul.mubr.f32.gmra.mrb[0].mxu0 %v337
      %v518 = vpop.f32.mrb[0].mxu0
      %v519 = vadd.f32 %v304, %v518
      %v520 = vpop.f32.mrb[0].mxu0
      %v521 = vadd.f32 %v304, %v520
      %522 = vmatprep.mubr.f32.mxu0 0.0
      %523 = vmatmul.mubr.f32.gmra.mrb[0].mxu0 %v340
      %v524 = vpop.f32.mrb[0].mxu0
      %v525 = vadd.f32 %v309, %v524
      %v526 = vpop.f32.mrb[0].mxu0
      %v527 = vadd.f32 %v309, %v526
      %528 = vdwg.mxu0
      %v529 = vtanh.pop %v418
      %v530 = vtanh.pop %v420
      %v531 = vtanh.pop %v507
      %v532 = vtanh.pop %v509
      %v533 = vtanh.pop %v424
      %v534 = vtanh.pop %v426
      %v535 = vtanh.pop %v513
      %v536 = vtanh.pop %v515
      %v537 = vtanh.pop %v430
      %v538 = vtanh.pop %v432
      %v539 = vtanh.pop %v519
      %v540 = vtanh.pop %v521
      %v541 = vtanh.pop %v436
      %v542 = vtanh.pop %v438
      %v543 = vtanh.pop %v525
      %v544 = vtanh.pop %v527
      %v545 = vld [vmem:[%s3] sm:$0xff]
      %v546 = vld [vmem:[%s3 + $0x8] sm:$0xff]
      %v547 = vld [vmem:[%s3 + $0x10] sm:$0xff]
      %v548 = vld [vmem:[%s3 + $0x18] sm:$0xff]
      %v549 = vld [vmem:[%s4] sm:$0xff]
      %v550 = vld [vmem:[%s4 + $0x8] sm:$0xff]
      %v551 = vld [vmem:[%s4 + $0x10] sm:$0xff]
      %v552 = vld [vmem:[%s4 + $0x18] sm:$0xff]
      %554 = vset.pattern.permute.xlu0 0
      %555 = vperm.xlu0 %554, %v549
      %v556 = vpop.permute.xlu0 %555
      %559 = vset.pattern.permute.xlu0 0
      %560 = vperm.xlu0 %559, %v550
      %v561 = vpop.permute.xlu0 %560
      %564 = vset.pattern.permute.xlu0 0
      %565 = vperm.xlu0 %564, %v551
      %v566 = vpop.permute.xlu0 %565
      %569 = vset.pattern.permute.xlu0 0
      %570 = vperm.xlu0 %569, %v552
      %v571 = vpop.permute.xlu0 %570
      %vm573 = vcmask 261120
      %v575 = vsel %vm573, %v545, 0
      %v578 = vsel %vm573, %v546, 0
      %v581 = vsel %vm573, %v547, 0
      %v584 = vsel %vm573, %v548, 0
      %586 = vmatprep.subr.mxu0 %v530
      %587 = vmatpush1.msra.mxu0 %v529
      %588 = vmatprep.subr.mxu0 %v534
      %589 = vmatpush1.msra.mxu0 %v533
      %590 = vmatprep.subr.mxu0 %v538
      %591 = vmatpush1.msra.mxu0 %v537
      %592 = vmatprep.subr.mxu0 %v542
      %593 = vmatpush1.msra.mxu0 %v541
      %594 = vmatprep.subr.mxu0 0.0
      %595 = vmatpush1.msra.mxu0 0.0
      %596 = vmatprep.subr.mxu0 0.0
      %597 = vmatpush1.msra.mxu0 0.0
      %598 = vmatprep.subr.mxu0 0.0
      %599 = vmatpush1.msra.mxu0 0.0
      %600 = vmatprep.subr.mxu0 0.0
      %601 = vmatpush1.msra.mxu0 0.0
      %602 = vmatprep.subr.mxu0 0.0
      %603 = vmatpush1.msra.mxu0 0.0
      %604 = vmatprep.subr.mxu0 0.0
      %605 = vmatpush1.msra.mxu0 0.0
      %606 = vmatprep.subr.mxu0 0.0
      %607 = vmatpush1.msra.mxu0 0.0
      %608 = vmatprep.subr.mxu0 0.0
      %609 = vmatpush1.msra.mxu0 0.0
      %610 = vmatprep.subr.mxu0 0.0
      %611 = vmatpush1.msra.mxu0 0.0
      %612 = vmatprep.subr.mxu0 0.0
      %613 = vmatpush1.msra.mxu0 0.0
      %614 = vmatprep.subr.mxu0 0.0
      %615 = vmatpush1.msra.mxu0 0.0
      %616 = vmatprep.subr.mxu0 0.0
      %617 = vmatpush1.msra.mxu0 0.0
      %618 = vmatprep.subr.mxu0 0.0
      %619 = vmatpush1.msra.mxu0 0.0
      %620 = vmatprep.subr.mxu0 0.0
      %621 = vmatpush1.msra.mxu0 0.0
      %622 = vmatprep.subr.mxu0 0.0
      %623 = vmatpush1.msra.mxu0 0.0
      %624 = vmatprep.subr.mxu0 0.0
      %625 = vmatpush1.msra.mxu0 0.0
      %626 = vmatprep.subr.mxu0 0.0
      %627 = vmatpush1.msra.mxu0 0.0
      %628 = vmatprep.subr.mxu0 0.0
      %629 = vmatpush1.msra.mxu0 0.0
      %630 = vmatprep.subr.mxu0 0.0
      %631 = vmatpush1.msra.mxu0 0.0
      %632 = vmatprep.subr.mxu0 0.0
      %633 = vmatpush1.msra.mxu0 0.0
      %634 = vmatprep.subr.mxu0 0.0
      %635 = vmatpush1.msra.mxu0 0.0
      %636 = vmatprep.subr.mxu0 0.0
      %637 = vmatpush1.msra.mxu0 0.0
      %638 = vmatprep.subr.mxu0 0.0
      %639 = vmatpush1.msra.mxu0 0.0
      %640 = vmatprep.subr.mxu0 0.0
      %641 = vmatpush1.msra.mxu0 0.0
      %642 = vmatprep.subr.mxu0 0.0
      %643 = vmatpush1.msra.mxu0 0.0
      %644 = vmatprep.subr.mxu0 0.0
      %645 = vmatpush1.msra.mxu0 0.0
      %646 = vmatprep.subr.mxu0 0.0
      %647 = vmatpush1.msra.mxu0 0.0
      %648 = vmatprep.subr.mxu0 0.0
      %649 = vmatpush1.msra.mxu0 0.0
      %650 = vmatprep.mubr.f32.mxu0 0.0
      %651 = vmatmul.mubr.f32.gmra.mrb[0].mxu0 %v575
      %v652 = vpop.f32.mrb[0].mxu0
      %v653 = vadd.f32 %v556, %v652
      %v654 = vpop.f32.mrb[0].mxu0
      %v655 = vadd.f32 %v556, %v654
      %656 = vmatprep.mubr.f32.mxu0 0.0
      %657 = vmatmul.mubr.f32.gmra.mrb[0].mxu0 %v578
      %v658 = vpop.f32.mrb[0].mxu0
      %v659 = vadd.f32 %v561, %v658
      %v660 = vpop.f32.mrb[0].mxu0
      %v661 = vadd.f32 %v561, %v660
      %662 = vmatprep.mubr.f32.mxu0 0.0
      %663 = vmatmul.mubr.f32.gmra.mrb[0].mxu0 %v581
      %v664 = vpop.f32.mrb[0].mxu0
      %v665 = vadd.f32 %v566, %v664
      %v666 = vpop.f32.mrb[0].mxu0
      %v667 = vadd.f32 %v566, %v666
      %668 = vmatprep.mubr.f32.mxu0 0.0
      %669 = vmatmul.mubr.f32.gmra.mrb[0].mxu0 %v584
      %v670 = vpop.f32.mrb[0].mxu0
      %v671 = vadd.f32 %v571, %v670
      %v672 = vpop.f32.mrb[0].mxu0
      %v673 = vadd.f32 %v571, %v672
      %674 = vdwg.mxu0
      %675 = vmatprep.subr.mxu0 %v532
      %676 = vmatpush1.msra.mxu0 %v531
      %677 = vmatprep.subr.mxu0 %v536
      %678 = vmatpush1.msra.mxu0 %v535
      %679 = vmatprep.subr.mxu0 %v540
      %680 = vmatpush1.msra.mxu0 %v539
      %681 = vmatprep.subr.mxu0 %v544
      %682 = vmatpush1.msra.mxu0 %v543
      %683 = vmatprep.subr.mxu0 0.0
      %684 = vmatpush1.msra.mxu0 0.0
      %685 = vmatprep.subr.mxu0 0.0
      %686 = vmatpush1.msra.mxu0 0.0
      %687 = vmatprep.subr.mxu0 0.0
      %688 = vmatpush1.msra.mxu0 0.0
      %689 = vmatprep.subr.mxu0 0.0
      %690 = vmatpush1.msra.mxu0 0.0
      %691 = vmatprep.subr.mxu0 0.0
      %692 = vmatpush1.msra.mxu0 0.0
      %693 = vmatprep.subr.mxu0 0.0
      %694 = vmatpush1.msra.mxu0 0.0
      %695 = vmatprep.subr.mxu0 0.0
      %696 = vmatpush1.msra.mxu0 0.0
      %697 = vmatprep.subr.mxu0 0.0
      %698 = vmatpush1.msra.mxu0 0.0
      %699 = vmatprep.subr.mxu0 0.0
      %700 = vmatpush1.msra.mxu0 0.0
      %701 = vmatprep.subr.mxu0 0.0
      %702 = vmatpush1.msra.mxu0 0.0
      %703 = vmatprep.subr.mxu0 0.0
      %704 = vmatpush1.msra.mxu0 0.0
      %705 = vmatprep.subr.mxu0 0.0
      %706 = vmatpush1.msra.mxu0 0.0
      %707 = vmatprep.subr.mxu0 0.0
      %708 = vmatpush1.msra.mxu0 0.0
      %709 = vmatprep.subr.mxu0 0.0
      %710 = vmatpush1.msra.mxu0 0.0
      %711 = vmatprep.subr.mxu0 0.0
      %712 = vmatpush1.msra.mxu0 0.0
      %713 = vmatprep.subr.mxu0 0.0
      %714 = vmatpush1.msra.mxu0 0.0
      %715 = vmatprep.subr.mxu0 0.0
      %716 = vmatpush1.msra.mxu0 0.0
      %717 = vmatprep.subr.mxu0 0.0
      %718 = vmatpush1.msra.mxu0 0.0
      %719 = vmatprep.subr.mxu0 0.0
      %720 = vmatpush1.msra.mxu0 0.0
      %721 = vmatprep.subr.mxu0 0.0
      %722 = vmatpush1.msra.mxu0 0.0
      %723 = vmatprep.subr.mxu0 0.0
      %724 = vmatpush1.msra.mxu0 0.0
      %725 = vmatprep.subr.mxu0 0.0
      %726 = vmatpush1.msra.mxu0 0.0
      %727 = vmatprep.subr.mxu0 0.0
      %728 = vmatpush1.msra.mxu0 0.0
      %729 = vmatprep.subr.mxu0 0.0
      %730 = vmatpush1.msra.mxu0 0.0
      %731 = vmatprep.subr.mxu0 0.0
      %732 = vmatpush1.msra.mxu0 0.0
      %733 = vmatprep.subr.mxu0 0.0
      %734 = vmatpush1.msra.mxu0 0.0
      %735 = vmatprep.subr.mxu0 0.0
      %736 = vmatpush1.msra.mxu0 0.0
      %737 = vmatprep.subr.mxu0 0.0
      %738 = vmatpush1.msra.mxu0 0.0
      %739 = vmatprep.mubr.f32.mxu0 0.0
      %740 = vmatmul.mubr.f32.gmra.mrb[0].mxu0 %v575
      %v741 = vpop.f32.mrb[0].mxu0
      %v742 = vadd.f32 %v556, %v741
      %v743 = vpop.f32.mrb[0].mxu0
      %v744 = vadd.f32 %v556, %v743
      %745 = vmatprep.mubr.f32.mxu0 0.0
      %746 = vmatmul.mubr.f32.gmra.mrb[0].mxu0 %v578
      %v747 = vpop.f32.mrb[0].mxu0
      %v748 = vadd.f32 %v561, %v747
      %v749 = vpop.f32.mrb[0].mxu0
      %v750 = vadd.f32 %v561, %v749
      %751 = vmatprep.mubr.f32.mxu0 0.0
      %752 = vmatmul.mubr.f32.gmra.mrb[0].mxu0 %v581
      %v753 = vpop.f32.mrb[0].mxu0
      %v754 = vadd.f32 %v566, %v753
      %v755 = vpop.f32.mrb[0].mxu0
      %v756 = vadd.f32 %v566, %v755
      %757 = vmatprep.mubr.f32.mxu0 0.0
      %758 = vmatmul.mubr.f32.gmra.mrb[0].mxu0 %v584
      %v759 = vpop.f32.mrb[0].mxu0
      %v760 = vadd.f32 %v571, %v759
      %v761 = vpop.f32.mrb[0].mxu0
      %v762 = vadd.f32 %v571, %v761
      %763 = vdwg.mxu0
      %v764 = vtanh.pop %v653
      %v765 = vtanh.pop %v655
      %v766 = vtanh.pop %v742
      %v767 = vtanh.pop %v744
      %v768 = vtanh.pop %v659
      %v769 = vtanh.pop %v661
      %v770 = vtanh.pop %v748
      %v771 = vtanh.pop %v750
      %v772 = vtanh.pop %v665
      %v773 = vtanh.pop %v667
      %v774 = vtanh.pop %v754
      %v775 = vtanh.pop %v756
      %v776 = vtanh.pop %v671
      %v777 = vtanh.pop %v673
      %v778 = vtanh.pop %v760
      %v779 = vtanh.pop %v762
      %s780 = scalar_lea.vmem %s3, 32
      %v781 = vld [vmem:[%s780] sm:$0xff]
      %v782 = vld [vmem:[%s780 + $0x8] sm:$0xff]
      %v783 = vld [vmem:[%s780 + $0x10] sm:$0xff]
      %v784 = vld [vmem:[%s780 + $0x18] sm:$0xff]
      %s785 = scalar_lea.vmem %s4, 32
      %v786 = vld [vmem:[%s785] sm:$0xff]
      %v787 = vld [vmem:[%s785 + $0x8] sm:$0xff]
      %v788 = vld [vmem:[%s785 + $0x10] sm:$0xff]
      %v789 = vld [vmem:[%s785 + $0x18] sm:$0xff]
      %791 = vset.pattern.permute.xlu0 0
      %792 = vperm.xlu0 %791, %v786
      %v793 = vpop.permute.xlu0 %792
      %796 = vset.pattern.permute.xlu0 0
      %797 = vperm.xlu0 %796, %v787
      %v798 = vpop.permute.xlu0 %797
      %801 = vset.pattern.permute.xlu0 0
      %802 = vperm.xlu0 %801, %v788
      %v803 = vpop.permute.xlu0 %802
      %806 = vset.pattern.permute.xlu0 0
      %807 = vperm.xlu0 %806, %v789
      %v808 = vpop.permute.xlu0 %807
      %v811 = vsel %vm573, %v781, 0
      %v814 = vsel %vm573, %v782, 0
      %v817 = vsel %vm573, %v783, 0
      %v820 = vsel %vm573, %v784, 0
      %822 = vmatprep.subr.mxu0 %v765
      %823 = vmatpush1.msra.mxu0 %v764
      %824 = vmatprep.subr.mxu0 %v769
      %825 = vmatpush1.msra.mxu0 %v768
      %826 = vmatprep.subr.mxu0 %v773
      %827 = vmatpush1.msra.mxu0 %v772
      %828 = vmatprep.subr.mxu0 %v777
      %829 = vmatpush1.msra.mxu0 %v776
      %830 = vmatprep.subr.mxu0 0.0
      %831 = vmatpush1.msra.mxu0 0.0
      %832 = vmatprep.subr.mxu0 0.0
      %833 = vmatpush1.msra.mxu0 0.0
      %834 = vmatprep.subr.mxu0 0.0
      %835 = vmatpush1.msra.mxu0 0.0
      %836 = vmatprep.subr.mxu0 0.0
      %837 = vmatpush1.msra.mxu0 0.0
      %838 = vmatprep.subr.mxu0 0.0
      %839 = vmatpush1.msra.mxu0 0.0
      %840 = vmatprep.subr.mxu0 0.0
      %841 = vmatpush1.msra.mxu0 0.0
      %842 = vmatprep.subr.mxu0 0.0
      %843 = vmatpush1.msra.mxu0 0.0
      %844 = vmatprep.subr.mxu0 0.0
      %845 = vmatpush1.msra.mxu0 0.0
      %846 = vmatprep.subr.mxu0 0.0
      %847 = vmatpush1.msra.mxu0 0.0
      %848 = vmatprep.subr.mxu0 0.0
      %849 = vmatpush1.msra.mxu0 0.0
      %850 = vmatprep.subr.mxu0 0.0
      %851 = vmatpush1.msra.mxu0 0.0
      %852 = vmatprep.subr.mxu0 0.0
      %853 = vmatpush1.msra.mxu0 0.0
      %854 = vmatprep.subr.mxu0 0.0
      %855 = vmatpush1.msra.mxu0 0.0
      %856 = vmatprep.subr.mxu0 0.0
      %857 = vmatpush1.msra.mxu0 0.0
      %858 = vmatprep.subr.mxu0 0.0
      %859 = vmatpush1.msra.mxu0 0.0
      %860 = vmatprep.subr.mxu0 0.0
      %861 = vmatpush1.msra.mxu0 0.0
      %862 = vmatprep.subr.mxu0 0.0
      %863 = vmatpush1.msra.mxu0 0.0
      %864 = vmatprep.subr.mxu0 0.0
      %865 = vmatpush1.msra.mxu0 0.0
      %866 = vmatprep.subr.mxu0 0.0
      %867 = vmatpush1.msra.mxu0 0.0
      %868 = vmatprep.subr.mxu0 0.0
      %869 = vmatpush1.msra.mxu0 0.0
      %870 = vmatprep.subr.mxu0 0.0
      %871 = vmatpush1.msra.mxu0 0.0
      %872 = vmatprep.subr.mxu0 0.0
      %873 = vmatpush1.msra.mxu0 0.0
      %874 = vmatprep.subr.mxu0 0.0
      %875 = vmatpush1.msra.mxu0 0.0
      %876 = vmatprep.subr.mxu0 0.0
      %877 = vmatpush1.msra.mxu0 0.0
      %878 = vmatprep.subr.mxu0 0.0
      %879 = vmatpush1.msra.mxu0 0.0
      %880 = vmatprep.subr.mxu0 0.0
      %881 = vmatpush1.msra.mxu0 0.0
      %882 = vmatprep.subr.mxu0 0.0
      %883 = vmatpush1.msra.mxu0 0.0
      %884 = vmatprep.subr.mxu0 0.0
      %885 = vmatpush1.msra.mxu0 0.0
      %886 = vmatprep.mubr.f32.mxu0 0.0
      %887 = vmatmul.mubr.f32.gmra.mrb[0].mxu0 %v811
      %v888 = vpop.f32.mrb[0].mxu0
      %v889 = vadd.f32 %v793, %v888
      %v890 = vpop.f32.mrb[0].mxu0
      %v891 = vadd.f32 %v793, %v890
      %892 = vmatprep.mubr.f32.mxu0 0.0
      %893 = vmatmul.mubr.f32.gmra.mrb[0].mxu0 %v814
      %v894 = vpop.f32.mrb[0].mxu0
      %v895 = vadd.f32 %v798, %v894
      %v896 = vpop.f32.mrb[0].mxu0
      %v897 = vadd.f32 %v798, %v896
      %898 = vmatprep.mubr.f32.mxu0 0.0
      %899 = vmatmul.mubr.f32.gmra.mrb[0].mxu0 %v817
      %v900 = vpop.f32.mrb[0].mxu0
      %v901 = vadd.f32 %v803, %v900
      %v902 = vpop.f32.mrb[0].mxu0
      %v903 = vadd.f32 %v803, %v902
      %904 = vmatprep.mubr.f32.mxu0 0.0
      %905 = vmatmul.mubr.f32.gmra.mrb[0].mxu0 %v820
      %v906 = vpop.f32.mrb[0].mxu0
      %v907 = vadd.f32 %v808, %v906
      %v908 = vpop.f32.mrb[0].mxu0
      %v909 = vadd.f32 %v808, %v908
      %910 = vdwg.mxu0
      %911 = vmatprep.subr.mxu0 %v767
      %912 = vmatpush1.msra.mxu0 %v766
      %913 = vmatprep.subr.mxu0 %v771
      %914 = vmatpush1.msra.mxu0 %v770
      %915 = vmatprep.subr.mxu0 %v775
      %916 = vmatpush1.msra.mxu0 %v774
      %917 = vmatprep.subr.mxu0 %v779
      %918 = vmatpush1.msra.mxu0 %v778
      %919 = vmatprep.subr.mxu0 0.0
      %920 = vmatpush1.msra.mxu0 0.0
      %921 = vmatprep.subr.mxu0 0.0
      %922 = vmatpush1.msra.mxu0 0.0
      %923 = vmatprep.subr.mxu0 0.0
      %924 = vmatpush1.msra.mxu0 0.0
      %925 = vmatprep.subr.mxu0 0.0
      %926 = vmatpush1.msra.mxu0 0.0
      %927 = vmatprep.subr.mxu0 0.0
      %928 = vmatpush1.msra.mxu0 0.0
      %929 = vmatprep.subr.mxu0 0.0
      %930 = vmatpush1.msra.mxu0 0.0
      %931 = vmatprep.subr.mxu0 0.0
      %932 = vmatpush1.msra.mxu0 0.0
      %933 = vmatprep.subr.mxu0 0.0
      %934 = vmatpush1.msra.mxu0 0.0
      %935 = vmatprep.subr.mxu0 0.0
      %936 = vmatpush1.msra.mxu0 0.0
      %937 = vmatprep.subr.mxu0 0.0
      %938 = vmatpush1.msra.mxu0 0.0
      %939 = vmatprep.subr.mxu0 0.0
      %940 = vmatpush1.msra.mxu0 0.0
      %941 = vmatprep.subr.mxu0 0.0
      %942 = vmatpush1.msra.mxu0 0.0
      %943 = vmatprep.subr.mxu0 0.0
      %944 = vmatpush1.msra.mxu0 0.0
      %945 = vmatprep.subr.mxu0 0.0
      %946 = vmatpush1.msra.mxu0 0.0
      %947 = vmatprep.subr.mxu0 0.0
      %948 = vmatpush1.msra.mxu0 0.0
      %949 = vmatprep.subr.mxu0 0.0
      %950 = vmatpush1.msra.mxu0 0.0
      %951 = vmatprep.subr.mxu0 0.0
      %952 = vmatpush1.msra.mxu0 0.0
      %953 = vmatprep.subr.mxu0 0.0
      %954 = vmatpush1.msra.mxu0 0.0
      %955 = vmatprep.subr.mxu0 0.0
      %956 = vmatpush1.msra.mxu0 0.0
      %957 = vmatprep.subr.mxu0 0.0
      %958 = vmatpush1.msra.mxu0 0.0
      %959 = vmatprep.subr.mxu0 0.0
      %960 = vmatpush1.msra.mxu0 0.0
      %961 = vmatprep.subr.mxu0 0.0
      %962 = vmatpush1.msra.mxu0 0.0
      %963 = vmatprep.subr.mxu0 0.0
      %964 = vmatpush1.msra.mxu0 0.0
      %965 = vmatprep.subr.mxu0 0.0
      %966 = vmatpush1.msra.mxu0 0.0
      %967 = vmatprep.subr.mxu0 0.0
      %968 = vmatpush1.msra.mxu0 0.0
      %969 = vmatprep.subr.mxu0 0.0
      %970 = vmatpush1.msra.mxu0 0.0
      %971 = vmatprep.subr.mxu0 0.0
      %972 = vmatpush1.msra.mxu0 0.0
      %973 = vmatprep.subr.mxu0 0.0
      %974 = vmatpush1.msra.mxu0 0.0
      %975 = vmatprep.mubr.f32.mxu0 0.0
      %976 = vmatmul.mubr.f32.gmra.mrb[0].mxu0 %v811
      %v977 = vpop.f32.mrb[0].mxu0
      %v978 = vadd.f32 %v793, %v977
      %v979 = vpop.f32.mrb[0].mxu0
      %v980 = vadd.f32 %v793, %v979
      %981 = vmatprep.mubr.f32.mxu0 0.0
      %982 = vmatmul.mubr.f32.gmra.mrb[0].mxu0 %v814
      %v983 = vpop.f32.mrb[0].mxu0
      %v984 = vadd.f32 %v798, %v983
      %v985 = vpop.f32.mrb[0].mxu0
      %v986 = vadd.f32 %v798, %v985
      %987 = vmatprep.mubr.f32.mxu0 0.0
      %988 = vmatmul.mubr.f32.gmra.mrb[0].mxu0 %v817
      %v989 = vpop.f32.mrb[0].mxu0
      %v990 = vadd.f32 %v803, %v989
      %v991 = vpop.f32.mrb[0].mxu0
      %v992 = vadd.f32 %v803, %v991
      %993 = vmatprep.mubr.f32.mxu0 0.0
      %994 = vmatmul.mubr.f32.gmra.mrb[0].mxu0 %v820
      %v995 = vpop.f32.mrb[0].mxu0
      %v996 = vadd.f32 %v808, %v995
      %v997 = vpop.f32.mrb[0].mxu0
      %v998 = vadd.f32 %v808, %v997
      %999 = vdwg.mxu0
      %v1000 = vtanh.pop %v889
      %v1001 = vtanh.pop %v891
      %v1002 = vtanh.pop %v978
      %v1003 = vtanh.pop %v980
      %v1004 = vtanh.pop %v895
      %v1005 = vtanh.pop %v897
      %v1006 = vtanh.pop %v984
      %v1007 = vtanh.pop %v986
      %v1008 = vtanh.pop %v901
      %v1009 = vtanh.pop %v903
      %v1010 = vtanh.pop %v990
      %v1011 = vtanh.pop %v992
      %v1012 = vtanh.pop %v907
      %v1013 = vtanh.pop %v909
      %v1014 = vtanh.pop %v996
      %v1015 = vtanh.pop %v998
      %s1016 = scalar_lea.vmem %s3, 64
      %v1017 = vld [vmem:[%s1016] sm:$0xff]
      %v1018 = vld [vmem:[%s1016 + $0x8] sm:$0xff]
      %v1019 = vld [vmem:[%s1016 + $0x10] sm:$0xff]
      %v1020 = vld [vmem:[%s1016 + $0x18] sm:$0xff]
      %s1021 = scalar_lea.vmem %s4, 64
      %v1022 = vld [vmem:[%s1021] sm:$0xff]
      %v1023 = vld [vmem:[%s1021 + $0x8] sm:$0xff]
      %v1024 = vld [vmem:[%s1021 + $0x10] sm:$0xff]
      %v1025 = vld [vmem:[%s1021 + $0x18] sm:$0xff]
      %1027 = vset.pattern.permute.xlu0 0
      %1028 = vperm.xlu0 %1027, %v1022
      %v1029 = vpop.permute.xlu0 %1028
      %1032 = vset.pattern.permute.xlu0 0
      %1033 = vperm.xlu0 %1032, %v1023
      %v1034 = vpop.permute.xlu0 %1033
      %1037 = vset.pattern.permute.xlu0 0
      %1038 = vperm.xlu0 %1037, %v1024
      %v1039 = vpop.permute.xlu0 %1038
      %1042 = vset.pattern.permute.xlu0 0
      %1043 = vperm.xlu0 %1042, %v1025
      %v1044 = vpop.permute.xlu0 %1043
      %v1047 = vsel %vm573, %v1017, 0
      %v1050 = vsel %vm573, %v1018, 0
      %v1053 = vsel %vm573, %v1019, 0
      %v1056 = vsel %vm573, %v1020, 0
      %1058 = vmatprep.subr.mxu0 %v1001
      %1059 = vmatpush1.msra.mxu0 %v1000
      %1060 = vmatprep.subr.mxu0 %v1005
      %1061 = vmatpush1.msra.mxu0 %v1004
      %1062 = vmatprep.subr.mxu0 %v1009
      %1063 = vmatpush1.msra.mxu0 %v1008
      %1064 = vmatprep.subr.mxu0 %v1013
      %1065 = vmatpush1.msra.mxu0 %v1012
      %1066 = vmatprep.subr.mxu0 0.0
      %1067 = vmatpush1.msra.mxu0 0.0
      %1068 = vmatprep.subr.mxu0 0.0
      %1069 = vmatpush1.msra.mxu0 0.0
      %1070 = vmatprep.subr.mxu0 0.0
      %1071 = vmatpush1.msra.mxu0 0.0
      %1072 = vmatprep.subr.mxu0 0.0
      %1073 = vmatpush1.msra.mxu0 0.0
      %1074 = vmatprep.subr.mxu0 0.0
      %1075 = vmatpush1.msra.mxu0 0.0
      %1076 = vmatprep.subr.mxu0 0.0
      %1077 = vmatpush1.msra.mxu0 0.0
      %1078 = vmatprep.subr.mxu0 0.0
      %1079 = vmatpush1.msra.mxu0 0.0
      %1080 = vmatprep.subr.mxu0 0.0
      %1081 = vmatpush1.msra.mxu0 0.0
      %1082 = vmatprep.subr.mxu0 0.0
      %1083 = vmatpush1.msra.mxu0 0.0
      %1084 = vmatprep.subr.mxu0 0.0
      %1085 = vmatpush1.msra.mxu0 0.0
      %1086 = vmatprep.subr.mxu0 0.0
      %1087 = vmatpush1.msra.mxu0 0.0
      %1088 = vmatprep.subr.mxu0 0.0
      %1089 = vmatpush1.msra.mxu0 0.0
      %1090 = vmatprep.subr.mxu0 0.0
      %1091 = vmatpush1.msra.mxu0 0.0
      %1092 = vmatprep.subr.mxu0 0.0
      %1093 = vmatpush1.msra.mxu0 0.0
      %1094 = vmatprep.subr.mxu0 0.0
      %1095 = vmatpush1.msra.mxu0 0.0
      %1096 = vmatprep.subr.mxu0 0.0
      %1097 = vmatpush1.msra.mxu0 0.0
      %1098 = vmatprep.subr.mxu0 0.0
      %1099 = vmatpush1.msra.mxu0 0.0
      %1100 = vmatprep.subr.mxu0 0.0
      %1101 = vmatpush1.msra.mxu0 0.0
      %1102 = vmatprep.subr.mxu0 0.0
      %1103 = vmatpush1.msra.mxu0 0.0
      %1104 = vmatprep.subr.mxu0 0.0
      %1105 = vmatpush1.msra.mxu0 0.0
      %1106 = vmatprep.subr.mxu0 0.0
      %1107 = vmatpush1.msra.mxu0 0.0
      %1108 = vmatprep.subr.mxu0 0.0
      %1109 = vmatpush1.msra.mxu0 0.0
      %1110 = vmatprep.subr.mxu0 0.0
      %1111 = vmatpush1.msra.mxu0 0.0
      %1112 = vmatprep.subr.mxu0 0.0
      %1113 = vmatpush1.msra.mxu0 0.0
      %1114 = vmatprep.subr.mxu0 0.0
      %1115 = vmatpush1.msra.mxu0 0.0
      %1116 = vmatprep.subr.mxu0 0.0
      %1117 = vmatpush1.msra.mxu0 0.0
      %1118 = vmatprep.subr.mxu0 0.0
      %1119 = vmatpush1.msra.mxu0 0.0
      %1120 = vmatprep.subr.mxu0 0.0
      %1121 = vmatpush1.msra.mxu0 0.0
      %1122 = vmatprep.mubr.f32.mxu0 0.0
      %1123 = vmatmul.mubr.f32.gmra.mrb[0].mxu0 %v1047
      %v1124 = vpop.f32.mrb[0].mxu0
      %v1125 = vadd.f32 %v1029, %v1124
      %v1126 = vpop.f32.mrb[0].mxu0
      %v1127 = vadd.f32 %v1029, %v1126
      %1128 = vmatprep.mubr.f32.mxu0 0.0
      %1129 = vmatmul.mubr.f32.gmra.mrb[0].mxu0 %v1050
      %v1130 = vpop.f32.mrb[0].mxu0
      %v1131 = vadd.f32 %v1034, %v1130
      %v1132 = vpop.f32.mrb[0].mxu0
      %v1133 = vadd.f32 %v1034, %v1132
      %1134 = vmatprep.mubr.f32.mxu0 0.0
      %1135 = vmatmul.mubr.f32.gmra.mrb[0].mxu0 %v1053
      %v1136 = vpop.f32.mrb[0].mxu0
      %v1137 = vadd.f32 %v1039, %v1136
      %v1138 = vpop.f32.mrb[0].mxu0
      %v1139 = vadd.f32 %v1039, %v1138
      %1140 = vmatprep.mubr.f32.mxu0 0.0
      %1141 = vmatmul.mubr.f32.gmra.mrb[0].mxu0 %v1056
      %v1142 = vpop.f32.mrb[0].mxu0
      %v1143 = vadd.f32 %v1044, %v1142
      %v1144 = vpop.f32.mrb[0].mxu0
      %v1145 = vadd.f32 %v1044, %v1144
      %1146 = vdwg.mxu0
      %1147 = vmatprep.subr.mxu0 %v1003
      %1148 = vmatpush1.msra.mxu0 %v1002
      %1149 = vmatprep.subr.mxu0 %v1007
      %1150 = vmatpush1.msra.mxu0 %v1006
      %1151 = vmatprep.subr.mxu0 %v1011
      %1152 = vmatpush1.msra.mxu0 %v1010
      %1153 = vmatprep.subr.mxu0 %v1015
      %1154 = vmatpush1.msra.mxu0 %v1014
      %1155 = vmatprep.subr.mxu0 0.0
      %1156 = vmatpush1.msra.mxu0 0.0
      %1157 = vmatprep.subr.mxu0 0.0
      %1158 = vmatpush1.msra.mxu0 0.0
      %1159 = vmatprep.subr.mxu0 0.0
      %1160 = vmatpush1.msra.mxu0 0.0
      %1161 = vmatprep.subr.mxu0 0.0
      %1162 = vmatpush1.msra.mxu0 0.0
      %1163 = vmatprep.subr.mxu0 0.0
      %1164 = vmatpush1.msra.mxu0 0.0
      %1165 = vmatprep.subr.mxu0 0.0
      %1166 = vmatpush1.msra.mxu0 0.0
      %1167 = vmatprep.subr.mxu0 0.0
      %1168 = vmatpush1.msra.mxu0 0.0
      %1169 = vmatprep.subr.mxu0 0.0
      %1170 = vmatpush1.msra.mxu0 0.0
      %1171 = vmatprep.subr.mxu0 0.0
      %1172 = vmatpush1.msra.mxu0 0.0
      %1173 = vmatprep.subr.mxu0 0.0
      %1174 = vmatpush1.msra.mxu0 0.0
      %1175 = vmatprep.subr.mxu0 0.0
      %1176 = vmatpush1.msra.mxu0 0.0
      %1177 = vmatprep.subr.mxu0 0.0
      %1178 = vmatpush1.msra.mxu0 0.0
      %1179 = vmatprep.subr.mxu0 0.0
      %1180 = vmatpush1.msra.mxu0 0.0
      %1181 = vmatprep.subr.mxu0 0.0
      %1182 = vmatpush1.msra.mxu0 0.0
      %1183 = vmatprep.subr.mxu0 0.0
      %1184 = vmatpush1.msra.mxu0 0.0
      %1185 = vmatprep.subr.mxu0 0.0
      %1186 = vmatpush1.msra.mxu0 0.0
      %1187 = vmatprep.subr.mxu0 0.0
      %1188 = vmatpush1.msra.mxu0 0.0
      %1189 = vmatprep.subr.mxu0 0.0
      %1190 = vmatpush1.msra.mxu0 0.0
      %1191 = vmatprep.subr.mxu0 0.0
      %1192 = vmatpush1.msra.mxu0 0.0
      %1193 = vmatprep.subr.mxu0 0.0
      %1194 = vmatpush1.msra.mxu0 0.0
      %1195 = vmatprep.subr.mxu0 0.0
      %1196 = vmatpush1.msra.mxu0 0.0
      %1197 = vmatprep.subr.mxu0 0.0
      %1198 = vmatpush1.msra.mxu0 0.0
      %1199 = vmatprep.subr.mxu0 0.0
      %1200 = vmatpush1.msra.mxu0 0.0
      %1201 = vmatprep.subr.mxu0 0.0
      %1202 = vmatpush1.msra.mxu0 0.0
      %1203 = vmatprep.subr.mxu0 0.0
      %1204 = vmatpush1.msra.mxu0 0.0
      %1205 = vmatprep.subr.mxu0 0.0
      %1206 = vmatpush1.msra.mxu0 0.0
      %1207 = vmatprep.subr.mxu0 0.0
      %1208 = vmatpush1.msra.mxu0 0.0
      %1209 = vmatprep.subr.mxu0 0.0
      %1210 = vmatpush1.msra.mxu0 0.0
      %1211 = vmatprep.mubr.f32.mxu0 0.0
      %1212 = vmatmul.mubr.f32.gmra.mrb[0].mxu0 %v1047
      %v1213 = vpop.f32.mrb[0].mxu0
      %v1214 = vadd.f32 %v1029, %v1213
      %v1215 = vpop.f32.mrb[0].mxu0
      %v1216 = vadd.f32 %v1029, %v1215
      %1217 = vmatprep.mubr.f32.mxu0 0.0
      %1218 = vmatmul.mubr.f32.gmra.mrb[0].mxu0 %v1050
      %v1219 = vpop.f32.mrb[0].mxu0
      %v1220 = vadd.f32 %v1034, %v1219
      %v1221 = vpop.f32.mrb[0].mxu0
      %v1222 = vadd.f32 %v1034, %v1221
      %1223 = vmatprep.mubr.f32.mxu0 0.0
      %1224 = vmatmul.mubr.f32.gmra.mrb[0].mxu0 %v1053
      %v1225 = vpop.f32.mrb[0].mxu0
      %v1226 = vadd.f32 %v1039, %v1225
      %v1227 = vpop.f32.mrb[0].mxu0
      %v1228 = vadd.f32 %v1039, %v1227
      %1229 = vmatprep.mubr.f32.mxu0 0.0
      %1230 = vmatmul.mubr.f32.gmra.mrb[0].mxu0 %v1056
      %v1231 = vpop.f32.mrb[0].mxu0
      %v1232 = vadd.f32 %v1044, %v1231
      %v1233 = vpop.f32.mrb[0].mxu0
      %v1234 = vadd.f32 %v1044, %v1233
      %1235 = vdwg.mxu0
      %v1236 = vtanh.pop %v1125
      %v1237 = vtanh.pop %v1127
      %v1238 = vtanh.pop %v1214
      %v1239 = vtanh.pop %v1216
      %v1240 = vtanh.pop %v1131
      %v1241 = vtanh.pop %v1133
      %v1242 = vtanh.pop %v1220
      %v1243 = vtanh.pop %v1222
      %v1244 = vtanh.pop %v1137
      %v1245 = vtanh.pop %v1139
      %v1246 = vtanh.pop %v1226
      %v1247 = vtanh.pop %v1228
      %v1248 = vtanh.pop %v1143
      %v1249 = vtanh.pop %v1145
      %v1250 = vtanh.pop %v1232
      %v1251 = vtanh.pop %v1234
      %v1252 = vld [vmem:[%s5] sm:$0x1]
      %v1253 = vld [vmem:[#allocation2] sm:$0x1]
      %1255 = vset.pattern.permute.xlu0 0
      %1256 = vperm.xlu0 %1255, %v1253
      %v1257 = vpop.permute.xlu0 %1256
      %v1259 = vlaneseq
      %v1260 = vshrl.u32 %v1259, 7
      %v1261 = vsub.s32 0, %v1260
      %v1262 = vrot.slane %v1257, %v1261
      %v1264 = vsel %vm573, %v1252, 0
      %1266 = vmatprep.subr.mxu0 %v1237
      %1267 = vmatpush1.msra.mxu0 %v1236
      %1268 = vmatprep.subr.mxu0 %v1241
      %1269 = vmatpush1.msra.mxu0 %v1240
      %1270 = vmatprep.subr.mxu0 %v1245
      %1271 = vmatpush1.msra.mxu0 %v1244
      %1272 = vmatprep.subr.mxu0 %v1249
      %1273 = vmatpush1.msra.mxu0 %v1248
      %1274 = vmatprep.subr.mxu0 0.0
      %1275 = vmatpush1.msra.mxu0 0.0
      %1276 = vmatprep.subr.mxu0 0.0
      %1277 = vmatpush1.msra.mxu0 0.0
      %1278 = vmatprep.subr.mxu0 0.0
      %1279 = vmatpush1.msra.mxu0 0.0
      %1280 = vmatprep.subr.mxu0 0.0
      %1281 = vmatpush1.msra.mxu0 0.0
      %1282 = vmatprep.subr.mxu0 0.0
      %1283 = vmatpush1.msra.mxu0 0.0
      %1284 = vmatprep.subr.mxu0 0.0
      %1285 = vmatpush1.msra.mxu0 0.0
      %1286 = vmatprep.subr.mxu0 0.0
      %1287 = vmatpush1.msra.mxu0 0.0
      %1288 = vmatprep.subr.mxu0 0.0
      %1289 = vmatpush1.msra.mxu0 0.0
      %1290 = vmatprep.subr.mxu0 0.0
      %1291 = vmatpush1.msra.mxu0 0.0
      %1292 = vmatprep.subr.mxu0 0.0
      %1293 = vmatpush1.msra.mxu0 0.0
      %1294 = vmatprep.subr.mxu0 0.0
      %1295 = vmatpush1.msra.mxu0 0.0
      %1296 = vmatprep.subr.mxu0 0.0
      %1297 = vmatpush1.msra.mxu0 0.0
      %1298 = vmatprep.subr.mxu0 0.0
      %1299 = vmatpush1.msra.mxu0 0.0
      %1300 = vmatprep.subr.mxu0 0.0
      %1301 = vmatpush1.msra.mxu0 0.0
      %1302 = vmatprep.subr.mxu0 0.0
      %1303 = vmatpush1.msra.mxu0 0.0
      %1304 = vmatprep.subr.mxu0 0.0
      %1305 = vmatpush1.msra.mxu0 0.0
      %1306 = vmatprep.subr.mxu0 0.0
      %1307 = vmatpush1.msra.mxu0 0.0
      %1308 = vmatprep.subr.mxu0 0.0
      %1309 = vmatpush1.msra.mxu0 0.0
      %1310 = vmatprep.subr.mxu0 0.0
      %1311 = vmatpush1.msra.mxu0 0.0
      %1312 = vmatprep.subr.mxu0 0.0
      %1313 = vmatpush1.msra.mxu0 0.0
      %1314 = vmatprep.subr.mxu0 0.0
      %1315 = vmatpush1.msra.mxu0 0.0
      %1316 = vmatprep.subr.mxu0 0.0
      %1317 = vmatpush1.msra.mxu0 0.0
      %1318 = vmatprep.subr.mxu0 0.0
      %1319 = vmatpush1.msra.mxu0 0.0
      %1320 = vmatprep.subr.mxu0 0.0
      %1321 = vmatpush1.msra.mxu0 0.0
      %1322 = vmatprep.subr.mxu0 0.0
      %1323 = vmatpush1.msra.mxu0 0.0
      %1324 = vmatprep.subr.mxu0 0.0
      %1325 = vmatpush1.msra.mxu0 0.0
      %1326 = vmatprep.subr.mxu0 0.0
      %1327 = vmatpush1.msra.mxu0 0.0
      %1328 = vmatprep.subr.mxu0 0.0
      %1329 = vmatpush1.msra.mxu0 0.0
      %1330 = vmatprep.mubr.f32.mxu0 0.0
      %1331 = vmatmul.mubr.f32.gmra.mrb[0].mxu0 %v1264
      %v1332 = vpop.f32.mrb[0].mxu0
      %v1333 = vadd.f32 %v1262, %v1332
      %v1334 = vpop.f32.mrb[0].mxu0
      %v1335 = vadd.f32 %v1262, %v1334
      %1336 = vdwg.mxu0
      %1337 = vmatprep.subr.mxu0 %v1239
      %1338 = vmatpush1.msra.mxu0 %v1238
      %1339 = vmatprep.subr.mxu0 %v1243
      %1340 = vmatpush1.msra.mxu0 %v1242
      %1341 = vmatprep.subr.mxu0 %v1247
      %1342 = vmatpush1.msra.mxu0 %v1246
      %1343 = vmatprep.subr.mxu0 %v1251
      %1344 = vmatpush1.msra.mxu0 %v1250
      %1345 = vmatprep.subr.mxu0 0.0
      %1346 = vmatpush1.msra.mxu0 0.0
      %1347 = vmatprep.subr.mxu0 0.0
      %1348 = vmatpush1.msra.mxu0 0.0
      %1349 = vmatprep.subr.mxu0 0.0
      %1350 = vmatpush1.msra.mxu0 0.0
      %1351 = vmatprep.subr.mxu0 0.0
      %1352 = vmatpush1.msra.mxu0 0.0
      %1353 = vmatprep.subr.mxu0 0.0
      %1354 = vmatpush1.msra.mxu0 0.0
      %1355 = vmatprep.subr.mxu0 0.0
      %1356 = vmatpush1.msra.mxu0 0.0
      %1357 = vmatprep.subr.mxu0 0.0
      %1358 = vmatpush1.msra.mxu0 0.0
      %1359 = vmatprep.subr.mxu0 0.0
      %1360 = vmatpush1.msra.mxu0 0.0
      %1361 = vmatprep.subr.mxu0 0.0
      %1362 = vmatpush1.msra.mxu0 0.0
      %1363 = vmatprep.subr.mxu0 0.0
      %1364 = vmatpush1.msra.mxu0 0.0
      %1365 = vmatprep.subr.mxu0 0.0
      %1366 = vmatpush1.msra.mxu0 0.0
      %1367 = vmatprep.subr.mxu0 0.0
      %1368 = vmatpush1.msra.mxu0 0.0
      %1369 = vmatprep.subr.mxu0 0.0
      %1370 = vmatpush1.msra.mxu0 0.0
      %1371 = vmatprep.subr.mxu0 0.0
      %1372 = vmatpush1.msra.mxu0 0.0
      %1373 = vmatprep.subr.mxu0 0.0
      %1374 = vmatpush1.msra.mxu0 0.0
      %1375 = vmatprep.subr.mxu0 0.0
      %1376 = vmatpush1.msra.mxu0 0.0
      %1377 = vmatprep.subr.mxu0 0.0
      %1378 = vmatpush1.msra.mxu0 0.0
      %1379 = vmatprep.subr.mxu0 0.0
      %1380 = vmatpush1.msra.mxu0 0.0
      %1381 = vmatprep.subr.mxu0 0.0
      %1382 = vmatpush1.msra.mxu0 0.0
      %1383 = vmatprep.subr.mxu0 0.0
      %1384 = vmatpush1.msra.mxu0 0.0
      %1385 = vmatprep.subr.mxu0 0.0
      %1386 = vmatpush1.msra.mxu0 0.0
      %1387 = vmatprep.subr.mxu0 0.0
      %1388 = vmatpush1.msra.mxu0 0.0
      %1389 = vmatprep.subr.mxu0 0.0
      %1390 = vmatpush1.msra.mxu0 0.0
      %1391 = vmatprep.subr.mxu0 0.0
      %1392 = vmatpush1.msra.mxu0 0.0
      %1393 = vmatprep.subr.mxu0 0.0
      %1394 = vmatpush1.msra.mxu0 0.0
      %1395 = vmatprep.subr.mxu0 0.0
      %1396 = vmatpush1.msra.mxu0 0.0
      %1397 = vmatprep.subr.mxu0 0.0
      %1398 = vmatpush1.msra.mxu0 0.0
      %1399 = vmatprep.subr.mxu0 0.0
      %1400 = vmatpush1.msra.mxu0 0.0
      %1401 = vmatprep.mubr.f32.mxu0 0.0
      %1402 = vmatmul.mubr.f32.gmra.mrb[0].mxu0 %v1264
      %v1403 = vpop.f32.mrb[0].mxu0
      %v1404 = vadd.f32 %v1262, %v1403
      %v1405 = vpop.f32.mrb[0].mxu0
      %v1406 = vadd.f32 %v1262, %v1405
      %1407 = vdwg.mxu0
      %v1412 = vcombine.low %v1333, %v1335
      %v1413 = vcombine.low %v1404, %v1406
      %v1415 = vunpack.c.l.s4 1966171168
      %v1416 = vunpack.c.0.s8 %v1415
      %v1417 = vlaneseq
      %v1418 = vshrl.u32 %v1417, 7
      %v1419 = vsub.s32 %v1416, %v1418
      %v1420 = vrot.slane %v1412, %v1419
      %v1422 = vunpack.c.l.s4 1966171168
      %v1423 = vunpack.c.0.s8 %v1422
      %v1424 = vlaneseq
      %v1425 = vshrl.u32 %v1424, 7
      %v1426 = vsub.s32 %v1423, %v1425
      %v1427 = vrot.slane %v1413, %v1426
      %v1428 = vcombine.low %v1420, %v1427
      %v1430 = vunpack.c.l.s4 1966171168
      %v1431 = vunpack.c.0.s8 %v1430
      %v1432 = vlaneseq
      %v1433 = vshrl.u32 %v1432, 7
      %v1434 = vsub.s32 %v1431, %v1433
      %v1435 = vrot.slane %v1428, %v1434
      %v1437 = vlaneseq
      %vm1438 = vcmp.ge.s32.totalorder %v1437, 0
      %vm1439 = vcmp.lt.s32.totalorder %v1437, 512
      %vm1440 = vmand %vm1438, %vm1439
      %1441 = vst.msk [vmem:[%s280] sm:$0xf] %vm1440, %v1435
      %s1442 = smul.u32 4, %s20
      %p1443 = scmp.lt.s32.totalorder %s1442, 7
      %s1444 = scalar_select %p1443, %s1442, 7
      %s1445 = scalar_lea.vmem %s7, %s1444
      // Predicated region
      $region49: #{mlp_forward.1} parent=47 // pred_check
        %p1446 = pneg %p190
      $region50: #{mlp_forward.1} parent=47 // pred_check_branch
        %1448 = sbr.rel (%p1446) target = $region52
      $region51: #{mlp_forward.1} parent=47 // pred_region
        %s1449 = smul.u32 4, %s20
      $region52: #{mlp_forward.1} parent=47 // pred_fallthru
        _
    $region48: #{mlp_forward.1} parent=5 // pred_fallthru
      _
    %p1450 = scmp.le.s32.totalorder 2, %s15
    // Predicated region
    $region53: #{mlp_forward.1} parent=5 // pred_check
      %p1451 = pneg %p1450
    $region54: #{mlp_forward.1} parent=5 // pred_check_branch
      %1453 = sbr.rel (%p1451) target = $region56
    $region55: #{mlp_forward.1} parent=5 // pred_region
      %s1454 = ssub.s32 %s15, 2
      // Predicated region
      $region57: #{mlp_forward.1} parent=55 // pred_check
        %p1455 = pneg %p196
      $region58: #{mlp_forward.1} parent=55 // pred_check_branch
        %1457 = sbr.rel (%p1455) target = $region60
      $region59: #{mlp_forward.1} parent=55 // pred_region
        %s1458 = smul.u32 4, %s21
        %p1459 = scmp.lt.s32.totalorder %s1458, 7
        %s1460 = scalar_select %p1459, %s1458, 7
        %s1461 = scalar_lea.vmem %s7, %s1460
      $region60: #{mlp_forward.1} parent=55 // pred_fallthru
        _
    $region56: #{mlp_forward.1} parent=5 // pred_fallthru
      _
  $region6: #{mlp_forward.1} parent=0 // loop_footer
    %s19 = sadd.s32 1, %s15
  $region7: #{mlp_forward.1} parent=0 // loop_footer_branch
    %14 = sbr.rel target = $region3
  $region8: #{mlp_forward.1} parent=0 // loop_exit
    _

</llo_original>
